<compile_context>
chip_gen: v7x
topology: tpu7x:2x2x1
jax: 0.10.0
libtpu: 0.0.40
codegen_flags: <defaults>
</compile_context>

<pallas_src>
import math
import functools

import jax
import jax.numpy as jnp
from jax.experimental import pallas as pl
from jax.experimental.pallas import tpu as pltpu

LN_EPS = 1e-5  # nn.LayerNorm default


# ---------------------------------------------------------------------------
# Helpers
# ---------------------------------------------------------------------------
def _layernorm(x, gamma, beta):
    # f32 statistics
    mean = jnp.mean(x, axis=-1, keepdims=True)
    var = jnp.mean((x - mean) ** 2, axis=-1, keepdims=True)
    return (x - mean) * jax.lax.rsqrt(var + LN_EPS) * gamma + beta


def _pick_q_tile(seq_len):
    """Q-row tile: full sequence when small, otherwise an (8-aligned) divisor."""
    if seq_len <= 256:
        return seq_len
    for t in (512, 256, 128):
        if seq_len % t == 0:
            return t
    return seq_len


# ---------------------------------------------------------------------------
# Encoder-layer kernel: QKV + MHA + out-proj + LN1 + FFN + LN2 (+ optional PE add)
# one (batch, q-row-tile) per grid step
# ---------------------------------------------------------------------------
def _encoder_layer_kernel(*refs, num_heads, add_pe):
    if add_pe:
        (xq_ref, xf_ref, wqkv_ref, bqkv_ref, wo_ref,
         w1_ref, b1_ref, w2_ref, vec_ref, peq_ref, pef_ref, out_ref) = refs
    else:
        (xq_ref, xf_ref, wqkv_ref, bqkv_ref, wo_ref,
         w1_ref, b1_ref, w2_ref, vec_ref, out_ref) = refs
        peq_ref = pef_ref = None

    x_q = xq_ref[0].astype(jnp.float32)          # (TQ, D)  rows of this Q tile
    x_f = xf_ref[0].astype(jnp.float32)          # (S,  D)  full sequence (K/V)
    if add_pe:
        x_q = x_q + peq_ref[...]
        x_f = x_f + pef_ref[...]

    TQ, D = x_q.shape
    S = x_f.shape[0]
    H = num_heads
    d_k = D // H
    scale = 1.0 / math.sqrt(d_k)

    xq_b = x_q.astype(jnp.bfloat16)
    xf_b = x_f.astype(jnp.bfloat16)
    wqkv = wqkv_ref[...]                         # (D, 3D) bf16
    bqkv = bqkv_ref[...]                         # (1, 3D) f32

    # ----- QKV projections (bf16 MXU, f32 accumulation) -----
    if TQ == S:
        qkv = jnp.dot(xf_b, wqkv, preferred_element_type=jnp.float32) + bqkv   # (S, 3D)
        q = qkv[:, :D]
        k = qkv[:, D:2 * D]
        v = qkv[:, 2 * D:]
    else:
        q = jnp.dot(xq_b, wqkv[:, :D], preferred_element_type=jnp.float32) + bqkv[:, :D]
        kv = jnp.dot(xf_b, wqkv[:, D:], preferred_element_type=jnp.float32) + bqkv[:, D:]
        k = kv[:, :D]
        v = kv[:, D:]

    # ----- multi-head scaled-dot-product attention (batched over heads) -----
    q = q * scale
    qh = q.reshape(TQ, H, d_k).astype(jnp.bfloat16)
    kh = k.reshape(S, H, d_k).astype(jnp.bfloat16)
    vh = v.reshape(S, H, d_k).astype(jnp.bfloat16)

    scores = jnp.einsum("qhd,khd->hqk", qh, kh,
                        preferred_element_type=jnp.float32)         # (H, TQ, S) f32
    scores = scores - jnp.max(scores, axis=-1, keepdims=True)
    p = jnp.exp(scores)
    denom = jnp.sum(p, axis=-1, keepdims=True)
    p = p * pl.reciprocal(denom, approx=True)                       # softmax in f32

    attn = jnp.einsum("hqk,khd->qhd", p.astype(jnp.bfloat16), vh,
                      preferred_element_type=jnp.float32)           # (TQ, H, d_k)
    attn = attn.reshape(TQ, D)

    # ----- packed per-feature vectors -----
    vecs = vec_ref[...]                                              # (6, D) f32
    bo, g1, be1, b2, g2, be2 = (vecs[i:i + 1] for i in range(6))     # each (1, D)

    # ----- output projection + residual + LayerNorm 1 -----
    attn_out = jnp.dot(attn.astype(jnp.bfloat16), wo_ref[...],
                       preferred_element_type=jnp.float32) + bo
    y = _layernorm(x_q + attn_out, g1, be1)                          # (TQ, D) f32

    # ----- position-wise feed-forward + residual + LayerNorm 2 -----
    h1 = jnp.dot(y.astype(jnp.bfloat16), w1_ref[...],
                 preferred_element_type=jnp.float32) + b1_ref[...]
    h1 = jnp.maximum(h1, 0.0)
    ff = jnp.dot(h1.astype(jnp.bfloat16), w2_ref[...],
                 preferred_element_type=jnp.float32) + b2

    out_ref[0] = _layernorm(y + ff, g2, be2).astype(out_ref.dtype)


def encoder_layer(x, params, num_heads, pe=None, tq=None):
    """One encoder layer.  If `pe` (shape (S, D)) is given, the positional
    encoding add is fused at the top of the kernel (used for the first layer)."""
    B, S, D = x.shape
    d_ff = params["w1"].shape[1]
    if tq is None:
        tq = _pick_q_tile(S)
    assert S % tq == 0
    n_t = S // tq
    add_pe = pe is not None

    in_specs = [
        pl.BlockSpec((1, tq, D), lambda b, t: (b, t, 0)),   # x (Q-rows / residual)
        pl.BlockSpec((1, S, D), lambda b, t: (b, 0, 0)),    # x (full sequence, K/V)
        pl.BlockSpec((D, 3 * D), lambda b, t: (0, 0)),      # wqkv  (bf16)
        pl.BlockSpec((1, 3 * D), lambda b, t: (0, 0)),      # bqkv  (f32)
        pl.BlockSpec((D, D), lambda b, t: (0, 0)),          # wo    (bf16)
        pl.BlockSpec((D, d_ff), lambda b, t: (0, 0)),       # w1    (bf16)
        pl.BlockSpec((1, d_ff), lambda b, t: (0, 0)),       # b1    (f32)
        pl.BlockSpec((d_ff, D), lambda b, t: (0, 0)),       # w2    (bf16)
        pl.BlockSpec((6, D), lambda b, t: (0, 0)),          # packed vectors (f32)
    ]
    args = [x, x, params["wqkv"], params["bqkv"], params["wo"],
            params["w1"], params["b1"], params["w2"], params["vecs"]]
    if add_pe:
        in_specs += [
            pl.BlockSpec((tq, D), lambda b, t: (t, 0)),     # pe (Q-rows)
            pl.BlockSpec((S, D), lambda b, t: (0, 0)),      # pe (full sequence)
        ]
        args += [pe, pe]

    kernel = functools.partial(_encoder_layer_kernel,
                               num_heads=num_heads, add_pe=add_pe)

    return pl.pallas_call(
        kernel,
        out_shape=jax.ShapeDtypeStruct((B, S, D), jnp.float32),
        grid_spec=pltpu.PrefetchScalarGridSpec(
            num_scalar_prefetch=0,
            grid=(B, n_t),
            in_specs=in_specs,
            out_specs=pl.BlockSpec((1, tq, D), lambda b, t: (b, t, 0)),
        ),
        compiler_params=pltpu.CompilerParams(
            dimension_semantics=("parallel", "parallel"),
            vmem_limit_bytes=48 * 1024 * 1024,
        ),
    )(*args)


# ---------------------------------------------------------------------------
# Parameter construction + full encoder
# ---------------------------------------------------------------------------
def make_positional_encoding(d_model, max_len):
    position = jnp.arange(max_len, dtype=jnp.float32)[:, None]
    div_term = jnp.exp(
        jnp.arange(0, d_model, 2, dtype=jnp.float32) * (-math.log(10000.0) / d_model)
    )
    pe = jnp.zeros((max_len, d_model), dtype=jnp.float32)
    pe = pe.at[:, 0::2].set(jnp.sin(position * div_term))
    pe = pe.at[:, 1::2].set(jnp.cos(position * div_term))
    return pe  # (max_len, d_model)


def init_layer_params(key, d_model, d_ff):
    """Weights stored in the fused / packed layouts the kernel consumes.
    Matmul weights are kept in bf16 (f32 accumulation happens on the MXU)."""
    ks = jax.random.split(key, 6)
    s = 0.05
    wq = jax.random.normal(ks[0], (d_model, d_model), jnp.float32) * s
    wk = jax.random.normal(ks[1], (d_model, d_model), jnp.float32) * s
    wv = jax.random.normal(ks[2], (d_model, d_model), jnp.float32) * s
    wo = jax.random.normal(ks[3], (d_model, d_model), jnp.float32) * s
    w1 = jax.random.normal(ks[4], (d_model, d_ff), jnp.float32) * s
    w2 = jax.random.normal(ks[5], (d_ff, d_model), jnp.float32) * s

    zeros_d = jnp.zeros((1, d_model), jnp.float32)
    ones_d = jnp.ones((1, d_model), jnp.float32)
    # rows: bo, ln1 gamma, ln1 beta, b2, ln2 gamma, ln2 beta
    vecs = jnp.concatenate([zeros_d, ones_d, zeros_d, zeros_d, ones_d, zeros_d], axis=0)

    return {
        "wqkv": jnp.concatenate([wq, wk, wv], axis=1).astype(jnp.bfloat16),  # (D, 3D)
        "bqkv": jnp.zeros((1, 3 * d_model), jnp.float32),
        "wo": wo.astype(jnp.bfloat16),
        "w1": w1.astype(jnp.bfloat16),
        "b1": jnp.zeros((1, d_ff), jnp.float32),
        "w2": w2.astype(jnp.bfloat16),
        "vecs": vecs,                                                        # (6, D)
    }


def transformer_encoder(x, pe, layer_params, num_heads, tq=None):
    # TODO(synk): attention mask is not supported (module default mask=None);
    #             dropout is identity (eval-mode forward).
    S = x.shape[1]
    pe_s = pe[:S]
    for i, params in enumerate(layer_params):
        x = encoder_layer(x, params, num_heads,
                          pe=pe_s if i == 0 else None, tq=tq)
    return x


# ---------------------------------------------------------------------------
if __name__ == "__main__":
    # Small demo shapes (note: production shapes should keep d_model / d_ff
    # multiples of 128 so stores stay lane-dense and the MXU is filled).
    B, S, D = 2, 8, 32
    num_heads, num_layers, d_ff = 4, 2, 64
    max_len = 128  # positional table kept small for the demo (module uses 50000)

    key = jax.random.PRNGKey(0)
    k_x, *k_layers = jax.random.split(key, num_layers + 1)

    x = jax.random.normal(k_x, (B, S, D), jnp.float32)
    pe = make_positional_encoding(D, max_len)
    layer_params = [init_layer_params(k, D, d_ff) for k in k_layers]

    out = transformer_encoder(x, pe, layer_params, num_heads)
    out = jax.block_until_ready(out)
    assert out.shape == (B, S, D)
    assert out.dtype == jnp.float32
    print("KERNEL_OK")
</pallas_src>

<mosaic_0001>
module attributes {stable_mosaic.version = 11 : i64} {
  func.func @_encoder_layer_kernel(%arg0: i32, %arg1: i32, %arg2: memref<1x8x32xf32, #tpu.memory_space<vmem>>, %arg3: memref<1x8x32xf32, #tpu.memory_space<vmem>>, %arg4: memref<32x96xbf16, #tpu.memory_space<vmem>>, %arg5: memref<1x96xf32, #tpu.memory_space<vmem>>, %arg6: memref<32x32xbf16, #tpu.memory_space<vmem>>, %arg7: memref<32x64xbf16, #tpu.memory_space<vmem>>, %arg8: memref<1x64xf32, #tpu.memory_space<vmem>>, %arg9: memref<64x32xbf16, #tpu.memory_space<vmem>>, %arg10: memref<6x32xf32, #tpu.memory_space<vmem>>, %arg11: memref<8x32xf32, #tpu.memory_space<vmem>>, %arg12: memref<8x32xf32, #tpu.memory_space<vmem>>, %arg13: memref<1x8x32xf32, #tpu.memory_space<vmem>>) attributes {dimension_semantics = [#tpu.dimension_semantics<parallel>, #tpu.dimension_semantics<parallel>], iteration_bounds = array<i64: 2, 1>, scalar_prefetch = 0 : i64, scratch_operands = 0 : i64, tpu.core_type = #tpu.core_type<tc>, window_params = [{transform_indices = @transform_0, window_bounds = array<i64: 1, 8, 32>}, {transform_indices = @transform_1, window_bounds = array<i64: 1, 8, 32>}, {pipeline_mode = #tpu.pipeline_mode<synchronous>, transform_indices = @transform_2, window_bounds = array<i64: 32, 96>}, {pipeline_mode = #tpu.pipeline_mode<synchronous>, transform_indices = @transform_3, window_bounds = array<i64: 1, 96>}, {pipeline_mode = #tpu.pipeline_mode<synchronous>, transform_indices = @transform_4, window_bounds = array<i64: 32, 32>}, {pipeline_mode = #tpu.pipeline_mode<synchronous>, transform_indices = @transform_5, window_bounds = array<i64: 32, 64>}, {pipeline_mode = #tpu.pipeline_mode<synchronous>, transform_indices = @transform_6, window_bounds = array<i64: 1, 64>}, {pipeline_mode = #tpu.pipeline_mode<synchronous>, transform_indices = @transform_7, window_bounds = array<i64: 64, 32>}, {pipeline_mode = #tpu.pipeline_mode<synchronous>, transform_indices = @transform_8, window_bounds = array<i64: 6, 32>}, {transform_indices = @transform_9, window_bounds = array<i64: 8, 32>}, {pipeline_mode = #tpu.pipeline_mode<synchronous>, transform_indices = @transform_10, window_bounds = array<i64: 8, 32>}, {transform_indices = @transform_11, window_bounds = array<i64: 1, 8, 32>}]} {
    %c0 = arith.constant 0 : index
    %c0_0 = arith.constant 0 : index
    %c0_1 = arith.constant 0 : index
    %0 = vector.load %arg2[%c0, %c0_0, %c0_1] : memref<1x8x32xf32, #tpu.memory_space<vmem>>, vector<1x8x32xf32>
    %1 = vector.shape_cast %0 : vector<1x8x32xf32> to vector<8x32xf32>
    %c0_2 = arith.constant 0 : index
    %c0_3 = arith.constant 0 : index
    %c0_4 = arith.constant 0 : index
    %2 = vector.load %arg3[%c0_2, %c0_3, %c0_4] : memref<1x8x32xf32, #tpu.memory_space<vmem>>, vector<1x8x32xf32>
    %3 = vector.shape_cast %2 : vector<1x8x32xf32> to vector<8x32xf32>
    %c0_5 = arith.constant 0 : index
    %c0_6 = arith.constant 0 : index
    %4 = vector.load %arg11[%c0_5, %c0_6] : memref<8x32xf32, #tpu.memory_space<vmem>>, vector<8x32xf32>
    %5 = arith.addf %1, %4 : vector<8x32xf32>
    %c0_7 = arith.constant 0 : index
    %c0_8 = arith.constant 0 : index
    %6 = vector.load %arg12[%c0_7, %c0_8] : memref<8x32xf32, #tpu.memory_space<vmem>>, vector<8x32xf32>
    %7 = arith.addf %3, %6 : vector<8x32xf32>
    %8 = arith.truncf %7 : vector<8x32xf32> to vector<8x32xbf16>
    %c0_9 = arith.constant 0 : index
    %c0_10 = arith.constant 0 : index
    %9 = vector.load %arg4[%c0_9, %c0_10] : memref<32x96xbf16, #tpu.memory_space<vmem>>, vector<32x96xbf16>
    %c0_11 = arith.constant 0 : index
    %c0_12 = arith.constant 0 : index
    %10 = vector.load %arg5[%c0_11, %c0_12] : memref<1x96xf32, #tpu.memory_space<vmem>>, vector<1x96xf32>
    %cst = arith.constant dense<0.000000e+00> : vector<8x96xf32>
    %11 = tpu.matmul %8, %9, %cst {dimension_numbers = #tpu.dot_dimension_numbers<[1], [0], [0], [1], [0, 0, 1, 1], [], []>} : vector<8x32xbf16>, vector<32x96xbf16>, vector<8x96xf32> -> vector<8x96xf32>
    %12 = vector.broadcast %10 : vector<1x96xf32> to vector<8x96xf32>
    %13 = arith.addf %11, %12 : vector<8x96xf32>
    %14 = vector.extract_strided_slice %13 {offsets = [0, 0], sizes = [8, 32], strides = [1, 1]} : vector<8x96xf32> to vector<8x32xf32>
    %15 = vector.extract_strided_slice %13 {offsets = [0, 32], sizes = [8, 32], strides = [1, 1]} : vector<8x96xf32> to vector<8x32xf32>
    %16 = vector.extract_strided_slice %13 {offsets = [0, 64], sizes = [8, 32], strides = [1, 1]} : vector<8x96xf32> to vector<8x32xf32>
    %cst_13 = arith.constant 0.353553385 : f32
    %17 = vector.broadcast %cst_13 : f32 to vector<8x32xf32>
    %18 = arith.mulf %14, %17 : vector<8x32xf32>
    %19 = vector.shape_cast %18 : vector<8x32xf32> to vector<8x4x8xf32>
    %20 = arith.truncf %19 : vector<8x4x8xf32> to vector<8x4x8xbf16>
    %21 = vector.shape_cast %15 : vector<8x32xf32> to vector<8x4x8xf32>
    %22 = arith.truncf %21 : vector<8x4x8xf32> to vector<8x4x8xbf16>
    %23 = vector.shape_cast %16 : vector<8x32xf32> to vector<8x4x8xf32>
    %24 = arith.truncf %23 : vector<8x4x8xf32> to vector<8x4x8xbf16>
    "tpu.trace_start"() <{level = 10 : i32, message = "qhd,khd->hqk"}> : () -> ()
    %cst_14 = arith.constant dense<0.000000e+00> : vector<4x8x8xf32>
    %25 = tpu.matmul %20, %22, %cst_14 {dimension_numbers = #tpu.dot_dimension_numbers<[2], [2], [0], [0], [0, 1, 0, 0, 1, 0], [1], [1]>} : vector<8x4x8xbf16>, vector<8x4x8xbf16>, vector<4x8x8xf32> -> vector<4x8x8xf32>
    "tpu.trace_stop"() : () -> ()
    %cst_15 = arith.constant dense<0xFF800000> : vector<4x8xf32>
    %26 = vector.multi_reduction <maximumf>, %25, %cst_15 [2] : vector<4x8x8xf32> to vector<4x8xf32>
    %27 = vector.shape_cast %26 : vector<4x8xf32> to vector<4x8x1xf32>
    %28 = vector.broadcast %27 : vector<4x8x1xf32> to vector<4x8x8xf32>
    %29 = arith.subf %25, %28 : vector<4x8x8xf32>
    %30 = math.exp %29 : vector<4x8x8xf32>
    %cst_16 = arith.constant dense<0.000000e+00> : vector<4x8xf32>
    %31 = vector.multi_reduction <add>, %30, %cst_16 [2] : vector<4x8x8xf32> to vector<4x8xf32>
    %32 = vector.shape_cast %31 : vector<4x8xf32> to vector<4x8x1xf32>
    %33 = tpu.reciprocal %32 {approx = true} : vector<4x8x1xf32> -> vector<4x8x1xf32>
    %34 = vector.broadcast %33 : vector<4x8x1xf32> to vector<4x8x8xf32>
    %35 = arith.mulf %30, %34 : vector<4x8x8xf32>
    %36 = arith.truncf %35 : vector<4x8x8xf32> to vector<4x8x8xbf16>
    "tpu.trace_start"() <{level = 10 : i32, message = "hqk,khd->qhd"}> : () -> ()
    %cst_17 = arith.constant dense<0.000000e+00> : vector<4x8x8xf32>
    %37 = tpu.matmul %24, %36, %cst_17 {dimension_numbers = #tpu.dot_dimension_numbers<[0], [2], [2], [1], [0, 1, 0, 2, 1, 1], [1], [0]>} : vector<8x4x8xbf16>, vector<4x8x8xbf16>, vector<4x8x8xf32> -> vector<4x8x8xf32>
    %38 = tpu.transpose %37, [2, 0, 1] : vector<4x8x8xf32> -> vector<8x4x8xf32>
    "tpu.trace_stop"() : () -> ()
    %39 = vector.shape_cast %38 : vector<8x4x8xf32> to vector<8x32xf32>
    %c0_18 = arith.constant 0 : index
    %c0_19 = arith.constant 0 : index
    %40 = vector.load %arg10[%c0_18, %c0_19] : memref<6x32xf32, #tpu.memory_space<vmem>>, vector<6x32xf32>
    %41 = vector.extract_strided_slice %40 {offsets = [0, 0], sizes = [1, 32], strides = [1, 1]} : vector<6x32xf32> to vector<1x32xf32>
    %42 = vector.extract_strided_slice %40 {offsets = [1, 0], sizes = [1, 32], strides = [1, 1]} : vector<6x32xf32> to vector<1x32xf32>
    %43 = vector.extract_strided_slice %40 {offsets = [2, 0], sizes = [1, 32], strides = [1, 1]} : vector<6x32xf32> to vector<1x32xf32>
    %44 = vector.extract_strided_slice %40 {offsets = [3, 0], sizes = [1, 32], strides = [1, 1]} : vector<6x32xf32> to vector<1x32xf32>
    %45 = vector.extract_strided_slice %40 {offsets = [4, 0], sizes = [1, 32], strides = [1, 1]} : vector<6x32xf32> to vector<1x32xf32>
    %46 = vector.extract_strided_slice %40 {offsets = [5, 0], sizes = [1, 32], strides = [1, 1]} : vector<6x32xf32> to vector<1x32xf32>
    %47 = arith.truncf %39 : vector<8x32xf32> to vector<8x32xbf16>
    %c0_20 = arith.constant 0 : index
    %c0_21 = arith.constant 0 : index
    %48 = vector.load %arg6[%c0_20, %c0_21] : memref<32x32xbf16, #tpu.memory_space<vmem>>, vector<32x32xbf16>
    %cst_22 = arith.constant dense<0.000000e+00> : vector<8x32xf32>
    %49 = tpu.matmul %47, %48, %cst_22 {dimension_numbers = #tpu.dot_dimension_numbers<[1], [0], [0], [1], [0, 0, 1, 1], [], []>} : vector<8x32xbf16>, vector<32x32xbf16>, vector<8x32xf32> -> vector<8x32xf32>
    %50 = vector.broadcast %41 : vector<1x32xf32> to vector<8x32xf32>
    %51 = arith.addf %49, %50 : vector<8x32xf32>
    %52 = arith.addf %5, %51 : vector<8x32xf32>
    %cst_23 = arith.constant dense<0.000000e+00> : vector<8xf32>
    %53 = vector.multi_reduction <add>, %52, %cst_23 [1] : vector<8x32xf32> to vector<8xf32>
    %54 = vector.shape_cast %53 : vector<8xf32> to vector<8x1xf32>
    %cst_24 = arith.constant 3.200000e+01 : f32
    %55 = vector.broadcast %cst_24 : f32 to vector<8x1xf32>
    %56 = arith.divf %54, %55 : vector<8x1xf32>
    %57 = vector.broadcast %56 : vector<8x1xf32> to vector<8x32xf32>
    %58 = arith.subf %52, %57 : vector<8x32xf32>
    %59 = arith.mulf %58, %58 : vector<8x32xf32>
    %cst_25 = arith.constant dense<0.000000e+00> : vector<8xf32>
    %60 = vector.multi_reduction <add>, %59, %cst_25 [1] : vector<8x32xf32> to vector<8xf32>
    %61 = vector.shape_cast %60 : vector<8xf32> to vector<8x1xf32>
    %cst_26 = arith.constant 3.200000e+01 : f32
    %62 = vector.broadcast %cst_26 : f32 to vector<8x1xf32>
    %63 = arith.divf %61, %62 : vector<8x1xf32>
    %64 = vector.broadcast %56 : vector<8x1xf32> to vector<8x32xf32>
    %65 = arith.subf %52, %64 : vector<8x32xf32>
    %cst_27 = arith.constant 9.99999974E-6 : f32
    %66 = vector.broadcast %cst_27 : f32 to vector<8x1xf32>
    %67 = arith.addf %63, %66 : vector<8x1xf32>
    %68 = math.rsqrt %67 : vector<8x1xf32>
    %69 = vector.broadcast %68 : vector<8x1xf32> to vector<8x32xf32>
    %70 = arith.mulf %65, %69 : vector<8x32xf32>
    %71 = vector.broadcast %42 : vector<1x32xf32> to vector<8x32xf32>
    %72 = arith.mulf %70, %71 : vector<8x32xf32>
    %73 = vector.broadcast %43 : vector<1x32xf32> to vector<8x32xf32>
    %74 = arith.addf %72, %73 : vector<8x32xf32>
    %75 = arith.truncf %74 : vector<8x32xf32> to vector<8x32xbf16>
    %c0_28 = arith.constant 0 : index
    %c0_29 = arith.constant 0 : index
    %76 = vector.load %arg7[%c0_28, %c0_29] : memref<32x64xbf16, #tpu.memory_space<vmem>>, vector<32x64xbf16>
    %cst_30 = arith.constant dense<0.000000e+00> : vector<8x64xf32>
    %77 = tpu.matmul %75, %76, %cst_30 {dimension_numbers = #tpu.dot_dimension_numbers<[1], [0], [0], [1], [0, 0, 1, 1], [], []>} : vector<8x32xbf16>, vector<32x64xbf16>, vector<8x64xf32> -> vector<8x64xf32>
    %c0_31 = arith.constant 0 : index
    %c0_32 = arith.constant 0 : index
    %78 = vector.load %arg8[%c0_31, %c0_32] : memref<1x64xf32, #tpu.memory_space<vmem>>, vector<1x64xf32>
    %79 = vector.broadcast %78 : vector<1x64xf32> to vector<8x64xf32>
    %80 = arith.addf %77, %79 : vector<8x64xf32>
    %cst_33 = arith.constant 0.000000e+00 : f32
    %81 = vector.broadcast %cst_33 : f32 to vector<8x64xf32>
    %82 = arith.maximumf %80, %81 : vector<8x64xf32>
    %83 = arith.truncf %82 : vector<8x64xf32> to vector<8x64xbf16>
    %c0_34 = arith.constant 0 : index
    %c0_35 = arith.constant 0 : index
    %84 = vector.load %arg9[%c0_34, %c0_35] : memref<64x32xbf16, #tpu.memory_space<vmem>>, vector<64x32xbf16>
    %cst_36 = arith.constant dense<0.000000e+00> : vector<8x32xf32>
    %85 = tpu.matmul %83, %84, %cst_36 {dimension_numbers = #tpu.dot_dimension_numbers<[1], [0], [0], [1], [0, 0, 1, 1], [], []>} : vector<8x64xbf16>, vector<64x32xbf16>, vector<8x32xf32> -> vector<8x32xf32>
    %86 = vector.broadcast %44 : vector<1x32xf32> to vector<8x32xf32>
    %87 = arith.addf %85, %86 : vector<8x32xf32>
    %88 = arith.addf %74, %87 : vector<8x32xf32>
    %cst_37 = arith.constant dense<0.000000e+00> : vector<8xf32>
    %89 = vector.multi_reduction <add>, %88, %cst_37 [1] : vector<8x32xf32> to vector<8xf32>
    %90 = vector.shape_cast %89 : vector<8xf32> to vector<8x1xf32>
    %cst_38 = arith.constant 3.200000e+01 : f32
    %91 = vector.broadcast %cst_38 : f32 to vector<8x1xf32>
    %92 = arith.divf %90, %91 : vector<8x1xf32>
    %93 = vector.broadcast %92 : vector<8x1xf32> to vector<8x32xf32>
    %94 = arith.subf %88, %93 : vector<8x32xf32>
    %95 = arith.mulf %94, %94 : vector<8x32xf32>
    %cst_39 = arith.constant dense<0.000000e+00> : vector<8xf32>
    %96 = vector.multi_reduction <add>, %95, %cst_39 [1] : vector<8x32xf32> to vector<8xf32>
    %97 = vector.shape_cast %96 : vector<8xf32> to vector<8x1xf32>
    %cst_40 = arith.constant 3.200000e+01 : f32
    %98 = vector.broadcast %cst_40 : f32 to vector<8x1xf32>
    %99 = arith.divf %97, %98 : vector<8x1xf32>
    %100 = vector.broadcast %92 : vector<8x1xf32> to vector<8x32xf32>
    %101 = arith.subf %88, %100 : vector<8x32xf32>
    %cst_41 = arith.constant 9.99999974E-6 : f32
    %102 = vector.broadcast %cst_41 : f32 to vector<8x1xf32>
    %103 = arith.addf %99, %102 : vector<8x1xf32>
    %104 = math.rsqrt %103 : vector<8x1xf32>
    %105 = vector.broadcast %104 : vector<8x1xf32> to vector<8x32xf32>
    %106 = arith.mulf %101, %105 : vector<8x32xf32>
    %107 = vector.broadcast %45 : vector<1x32xf32> to vector<8x32xf32>
    %108 = arith.mulf %106, %107 : vector<8x32xf32>
    %109 = vector.broadcast %46 : vector<1x32xf32> to vector<8x32xf32>
    %110 = arith.addf %108, %109 : vector<8x32xf32>
    %c0_42 = arith.constant 0 : index
    %c0_43 = arith.constant 0 : index
    %c0_44 = arith.constant 0 : index
    %111 = vector.load %arg13[%c0_42, %c0_43, %c0_44] : memref<1x8x32xf32, #tpu.memory_space<vmem>>, vector<1x8x32xf32>
    %112 = vector.shape_cast %111 : vector<1x8x32xf32> to vector<8x32xf32>
    %113 = vector.shape_cast %110 : vector<8x32xf32> to vector<1x8x32xf32>
    tpu.vector_store %arg13[%c0_42, %c0_43, %c0_44], %113 {strides = array<i32>} : memref<1x8x32xf32, #tpu.memory_space<vmem>>, vector<1x8x32xf32>,
    return
  }
  func.func @transform_0(%arg0: i32, %arg1: i32) -> (i32, i32, i32) {
    %c0_i32 = arith.constant 0 : i32
    %c0_i32_0 = arith.constant 0 : i32
    return %arg0, %arg1, %c0_i32 : i32, i32, i32
  }
  func.func @transform_1(%arg0: i32, %arg1: i32) -> (i32, i32, i32) {
    %c0_i32 = arith.constant 0 : i32
    %c0_i32_0 = arith.constant 0 : i32
    %c0_i32_1 = arith.constant 0 : i32
    return %arg0, %c0_i32, %c0_i32_0 : i32, i32, i32
  }
  func.func @transform_2(%arg0: i32, %arg1: i32) -> (i32, i32) {
    %c0_i32 = arith.constant 0 : i32
    %c0_i32_0 = arith.constant 0 : i32
    %c0_i32_1 = arith.constant 0 : i32
    return %c0_i32, %c0_i32_0 : i32, i32
  }
  func.func @transform_3(%arg0: i32, %arg1: i32) -> (i32, i32) {
    %c0_i32 = arith.constant 0 : i32
    %c0_i32_0 = arith.constant 0 : i32
    %c0_i32_1 = arith.constant 0 : i32
    return %c0_i32, %c0_i32_0 : i32, i32
  }
  func.func @transform_4(%arg0: i32, %arg1: i32) -> (i32, i32) {
    %c0_i32 = arith.constant 0 : i32
    %c0_i32_0 = arith.constant 0 : i32
    %c0_i32_1 = arith.constant 0 : i32
    return %c0_i32, %c0_i32_0 : i32, i32
  }
  func.func @transform_5(%arg0: i32, %arg1: i32) -> (i32, i32) {
    %c0_i32 = arith.constant 0 : i32
    %c0_i32_0 = arith.constant 0 : i32
    %c0_i32_1 = arith.constant 0 : i32
    return %c0_i32, %c0_i32_0 : i32, i32
  }
  func.func @transform_6(%arg0: i32, %arg1: i32) -> (i32, i32) {
    %c0_i32 = arith.constant 0 : i32
    %c0_i32_0 = arith.constant 0 : i32
    %c0_i32_1 = arith.constant 0 : i32
    return %c0_i32, %c0_i32_0 : i32, i32
  }
  func.func @transform_7(%arg0: i32, %arg1: i32) -> (i32, i32) {
    %c0_i32 = arith.constant 0 : i32
    %c0_i32_0 = arith.constant 0 : i32
    %c0_i32_1 = arith.constant 0 : i32
    return %c0_i32, %c0_i32_0 : i32, i32
  }
  func.func @transform_8(%arg0: i32, %arg1: i32) -> (i32, i32) {
    %c0_i32 = arith.constant 0 : i32
    %c0_i32_0 = arith.constant 0 : i32
    %c0_i32_1 = arith.constant 0 : i32
    return %c0_i32, %c0_i32_0 : i32, i32
  }
  func.func @transform_9(%arg0: i32, %arg1: i32) -> (i32, i32) {
    %c0_i32 = arith.constant 0 : i32
    %c0_i32_0 = arith.constant 0 : i32
    return %arg1, %c0_i32 : i32, i32
  }
  func.func @transform_10(%arg0: i32, %arg1: i32) -> (i32, i32) {
    %c0_i32 = arith.constant 0 : i32
    %c0_i32_0 = arith.constant 0 : i32
    %c0_i32_1 = arith.constant 0 : i32
    return %c0_i32, %c0_i32_0 : i32, i32
  }
  func.func @transform_11(%arg0: i32, %arg1: i32) -> (i32, i32, i32) {
    %c0_i32 = arith.constant 0 : i32
    %c0_i32_0 = arith.constant 0 : i32
    return %arg0, %arg1, %c0_i32 : i32, i32, i32
  }
}

</mosaic_0001>

<llo_original>
// kernel: tpu_custom_call.1
$region0: #{tpu_custom_call.1}
  #allocation0 [shape = 'u32[]', space=smem, size = 0x4, offset = 0x4, fixed_abs, tag = 'smem constant byte address 0x4 - core index']
  #allocation1 [shape = 'u32[144,128]{1,0:T(1,128)}', space=vmem, size = 0x12000, scoped, tag = 'internal scratch']
  %s0 = inlined_call_operand.vmem [shape: f32[2,8,32], index: 0, kind: input, shape index: {}]
  %s1 = inlined_call_operand.vmem [shape: f32[2,8,32], index: 1, kind: input, shape index: {}]
  %s2 = inlined_call_operand.vmem [shape: bf16[32,96], index: 2, kind: input, shape index: {}]
  %s3 = inlined_call_operand.vmem [shape: f32[1,96], index: 3, kind: input, shape index: {}]
  %s4 = inlined_call_operand.hbm [shape: bf16[32,32], index: 4, kind: input, shape index: {}]
  %s5 = inlined_call_operand.hbm [shape: bf16[32,64], index: 5, kind: input, shape index: {}]
  %s6 = inlined_call_operand.vmem [shape: f32[1,64], index: 6, kind: input, shape index: {}]
  %s7 = inlined_call_operand.vmem [shape: bf16[64,32], index: 7, kind: input, shape index: {}]
  %s8 = inlined_call_operand.vmem [shape: f32[6,32], index: 8, kind: input, shape index: {}]
  %s9 = inlined_call_operand.vmem [shape: f32[8,32], index: 9, kind: input, shape index: {}]
  %s10 = inlined_call_operand.hbm [shape: f32[8,32], index: 10, kind: input, shape index: {}]
  %s11 = inlined_call_operand.hbm [shape: f32[2,8,32], index: 11, kind: output, shape index: {}]
  %s12 = sld [smem:[#allocation0]]
  $region89: #{tpu_custom_call.1} parent=0
    _
  %s14 = ssub.s32 1, %s12
  %s15 = scalar_select 0, %s14, %s12
  $region1: #{tpu_custom_call.1} parent=0
    #allocation2 [shape = 'u8[8192]{0}', space=vmem, size = 0x2000, scoped, tag = 'input window, operand 4, single buffered']
    #allocation3 [shape = 's32[2]{0}', space=sflag, size = 0x8, scoped, tag = 'scoped memory for tpu_custom_call.1']
    #allocation4 [shape = 's32[2]{0}', space=sflag, size = 0x8, scoped, tag = 'scoped memory for tpu_custom_call.1']
    #allocation5 [shape = 'u8[8192]{0}', space=vmem, size = 0x2000, scoped, tag = 'input window, operand 5, single buffered']
    #allocation6 [shape = 's32[1]{0}', space=sflag, size = 0x4, scoped, tag = 'scoped memory for tpu_custom_call.1']
    #allocation7 [shape = 'u8[4096]{0}', space=vmem, size = 0x1000, scoped, tag = 'input window, operand 10, single buffered']
    #allocation8 [shape = 'u8[8192]{0}', space=vmem, size = 0x2000, scoped, tag = 'output window, operand 0']
    %16 = vsyncpa [#allocation3], 0
    %17 = vsyncpa [#allocation6], 0
    %18 = vsyncpa [#allocation4], 0
    %s19 = scalar_lea.sflag [#allocation4], 1
    %20 = vsyncpa %s19, 0
    loop: start=0, step=1, limit=4
    $region2: #{tpu_custom_call.1} parent=1 // loop_pre_header
      _
    $region3: #{tpu_custom_call.1} parent=1 // loop_header
      %s22 = sphi 0, %s26
      %p23 = scmp.ge.s32.totalorder %s22, 4
      %s29 = sphi 0, %s41
      %s30 = sphi 0, %s37
      %s31 = sphi 0, %s29
      %s32 = sphi 0, %s30
      %s33 = sphi 0, %s31
      %s34 = sphi 0, %s32
      %s46 = sphi 0, %s48
      %s49 = sphi 0, %s46
      %s50 = sphi 0, %s49
      %s66 = sphi 0, %s50
      %s72 = sphi 0, %s74
      %s75 = sphi 0, %s72
      %s76 = sphi 0, %s75
      %s92 = sphi 0, %s76
      %s96 = sphi 0, %s96
      %s98 = sphi 0, %s96
      %s99 = sphi 0, %s98
      %s113 = sphi 0, %s99
      %s117 = sphi 0, %s117
      %s119 = sphi 0, %s117
      %s120 = sphi 0, %s119
      %s134 = sphi 0, %s120
      %s138 = sphi 0, %s138
      %s140 = sphi 0, %s138
      %s141 = sphi 0, %s140
      %s155 = sphi 0, %s141
      %s159 = sphi 0, %s159
      %s161 = sphi 0, %s159
      %s162 = sphi 0, %s161
      %s176 = sphi 0, %s162
      %s180 = sphi 0, %s180
      %s182 = sphi 0, %s180
      %s183 = sphi 0, %s182
      %s197 = sphi 0, %s183
      %s201 = sphi 0, %s201
      %s203 = sphi 0, %s201
      %s204 = sphi 0, %s203
      %s218 = sphi 0, %s204
      %s222 = sphi 0, %s222
      %s224 = sphi 0, %s222
      %s225 = sphi 0, %s224
      %s239 = sphi 0, %s225
      %s245 = sphi 0, %s247
      %s248 = sphi 0, %s245
      %s249 = sphi 0, %s248
      %s265 = sphi 0, %s249
      %s269 = sphi 0, %s269
      %s271 = sphi 0, %s269
      %s272 = sphi 0, %s271
      %s286 = sphi 0, %s272
      %s294 = sphi 0, %s296
      %s297 = sphi 0, %s294
      %s298 = sphi 0, %s297
      %s314 = sphi 0, %s298
    $region4: #{tpu_custom_call.1} parent=1 // loop_header_branch
      %25 = sbr.rel (%p23) target = $region8
    $region5: #{tpu_custom_call.1} parent=1 // loop_body
      %s27 = ssub.s32 %s22, 1
      %s28 = ssub.s32 %s22, 2
      %s35 = sadd.s32 1, %s30
      %p36 = scmp.ge.s32.totalorder %s35, 1
      %s37 = scalar_select %p36, 0, %s35
      %s38 = sadd.s32 1, %s29
      %s39 = scalar_select %p36, %s38, %s29
      %p40 = scmp.ge.s32.totalorder %s39, 2
      %s41 = scalar_select %p40, 0, %s39
      %s42 = ssub.s32 %s29, %s41
      %s43 = ssub.s32 %s30, %s37
      %s44 = sor.u32 %s42, %s43
      %p45 = scmp.eq.s32.totalorder %s44, 0
      %s47 = sadd.s32 %s46, 1
      %s48 = scalar_select %p45, %s46, %s47
      %p51 = pneg %p45
      %p52 = scmp.eq.s32.totalorder %s22, 1
      %p53 = por %p51, %p52
      %p54 = scmp.ne.s32.totalorder %s46, %s49
      %p55 = scmp.eq.s32.totalorder %s22, 0
      %p56 = por %p54, %p55
      %p57 = scmp.ne.s32.totalorder %s46, %s49
      %p58 = scmp.eq.s32.totalorder %s27, 1
      %p59 = por %p57, %p58
      %p60 = scmp.ne.s32.totalorder %s49, %s50
      %p61 = scmp.eq.s32.totalorder %s27, 0
      %p62 = por %p60, %p61
      %p63 = scmp.ne.s32.totalorder %s49, %s50
      %p64 = scmp.eq.s32.totalorder %s28, 1
      %p65 = por %p63, %p64
      %p67 = scmp.ne.s32.totalorder %s50, %s66
      %p68 = scmp.eq.s32.totalorder %s28, 0
      %p69 = por %p67, %p68
      %s70 = ssub.s32 %s29, %s41
      %p71 = scmp.eq.s32.totalorder %s70, 0
      %s73 = sadd.s32 %s72, 1
      %s74 = scalar_select %p71, %s72, %s73
      %p77 = pneg %p71
      %p78 = scmp.eq.s32.totalorder %s22, 1
      %p79 = por %p77, %p78
      %p80 = scmp.ne.s32.totalorder %s72, %s75
      %p81 = scmp.eq.s32.totalorder %s22, 0
      %p82 = por %p80, %p81
      %p83 = scmp.ne.s32.totalorder %s72, %s75
      %p84 = scmp.eq.s32.totalorder %s27, 1
      %p85 = por %p83, %p84
      %p86 = scmp.ne.s32.totalorder %s75, %s76
      %p87 = scmp.eq.s32.totalorder %s27, 0
      %p88 = por %p86, %p87
      %p89 = scmp.ne.s32.totalorder %s75, %s76
      %p90 = scmp.eq.s32.totalorder %s28, 1
      %p91 = por %p89, %p90
      %p93 = scmp.ne.s32.totalorder %s76, %s92
      %p94 = scmp.eq.s32.totalorder %s28, 0
      %p95 = por %p93, %p94
      %s97 = sadd.s32 %s96, 1
      %p100 = scmp.eq.s32.totalorder %s22, 1
      %p101 = scmp.ne.s32.totalorder %s96, %s98
      %p102 = scmp.eq.s32.totalorder %s22, 0
      %p103 = por %p101, %p102
      %p104 = scmp.ne.s32.totalorder %s96, %s98
      %p105 = scmp.eq.s32.totalorder %s27, 1
      %p106 = por %p104, %p105
      %p107 = scmp.ne.s32.totalorder %s98, %s99
      %p108 = scmp.eq.s32.totalorder %s27, 0
      %p109 = por %p107, %p108
      %p110 = scmp.ne.s32.totalorder %s98, %s99
      %p111 = scmp.eq.s32.totalorder %s28, 1
      %p112 = por %p110, %p111
      %p114 = scmp.ne.s32.totalorder %s99, %s113
      %p115 = scmp.eq.s32.totalorder %s28, 0
      %p116 = por %p114, %p115
      %s118 = sadd.s32 %s117, 1
      %p121 = scmp.eq.s32.totalorder %s22, 1
      %p122 = scmp.ne.s32.totalorder %s117, %s119
      %p123 = scmp.eq.s32.totalorder %s22, 0
      %p124 = por %p122, %p123
      %p125 = scmp.ne.s32.totalorder %s117, %s119
      %p126 = scmp.eq.s32.totalorder %s27, 1
      %p127 = por %p125, %p126
      %p128 = scmp.ne.s32.totalorder %s119, %s120
      %p129 = scmp.eq.s32.totalorder %s27, 0
      %p130 = por %p128, %p129
      %p131 = scmp.ne.s32.totalorder %s119, %s120
      %p132 = scmp.eq.s32.totalorder %s28, 1
      %p133 = por %p131, %p132
      %p135 = scmp.ne.s32.totalorder %s120, %s134
      %p136 = scmp.eq.s32.totalorder %s28, 0
      %p137 = por %p135, %p136
      %s139 = sadd.s32 %s138, 1
      %p142 = scmp.eq.s32.totalorder %s22, 1
      %p143 = scmp.ne.s32.totalorder %s138, %s140
      %p144 = scmp.eq.s32.totalorder %s22, 0
      %p145 = por %p143, %p144
      %p146 = scmp.ne.s32.totalorder %s138, %s140
      %p147 = scmp.eq.s32.totalorder %s27, 1
      %p148 = por %p146, %p147
      %p149 = scmp.ne.s32.totalorder %s140, %s141
      %p150 = scmp.eq.s32.totalorder %s27, 0
      %p151 = por %p149, %p150
      %p152 = scmp.ne.s32.totalorder %s140, %s141
      %p153 = scmp.eq.s32.totalorder %s28, 1
      %p154 = por %p152, %p153
      %p156 = scmp.ne.s32.totalorder %s141, %s155
      %p157 = scmp.eq.s32.totalorder %s28, 0
      %p158 = por %p156, %p157
      %s160 = sadd.s32 %s159, 1
      %p163 = scmp.eq.s32.totalorder %s22, 1
      %p164 = scmp.ne.s32.totalorder %s159, %s161
      %p165 = scmp.eq.s32.totalorder %s22, 0
      %p166 = por %p164, %p165
      %p167 = scmp.ne.s32.totalorder %s159, %s161
      %p168 = scmp.eq.s32.totalorder %s27, 1
      %p169 = por %p167, %p168
      %p170 = scmp.ne.s32.totalorder %s161, %s162
      %p171 = scmp.eq.s32.totalorder %s27, 0
      %p172 = por %p170, %p171
      %p173 = scmp.ne.s32.totalorder %s161, %s162
      %p174 = scmp.eq.s32.totalorder %s28, 1
      %p175 = por %p173, %p174
      %p177 = scmp.ne.s32.totalorder %s162, %s176
      %p178 = scmp.eq.s32.totalorder %s28, 0
      %p179 = por %p177, %p178
      %s181 = sadd.s32 %s180, 1
      %p184 = scmp.eq.s32.totalorder %s22, 1
      %p185 = scmp.ne.s32.totalorder %s180, %s182
      %p186 = scmp.eq.s32.totalorder %s22, 0
      %p187 = por %p185, %p186
      %p188 = scmp.ne.s32.totalorder %s180, %s182
      %p189 = scmp.eq.s32.totalorder %s27, 1
      %p190 = por %p188, %p189
      %p191 = scmp.ne.s32.totalorder %s182, %s183
      %p192 = scmp.eq.s32.totalorder %s27, 0
      %p193 = por %p191, %p192
      %p194 = scmp.ne.s32.totalorder %s182, %s183
      %p195 = scmp.eq.s32.totalorder %s28, 1
      %p196 = por %p194, %p195
      %p198 = scmp.ne.s32.totalorder %s183, %s197
      %p199 = scmp.eq.s32.totalorder %s28, 0
      %p200 = por %p198, %p199
      %s202 = sadd.s32 %s201, 1
      %p205 = scmp.eq.s32.totalorder %s22, 1
      %p206 = scmp.ne.s32.totalorder %s201, %s203
      %p207 = scmp.eq.s32.totalorder %s22, 0
      %p208 = por %p206, %p207
      %p209 = scmp.ne.s32.totalorder %s201, %s203
      %p210 = scmp.eq.s32.totalorder %s27, 1
      %p211 = por %p209, %p210
      %p212 = scmp.ne.s32.totalorder %s203, %s204
      %p213 = scmp.eq.s32.totalorder %s27, 0
      %p214 = por %p212, %p213
      %p215 = scmp.ne.s32.totalorder %s203, %s204
      %p216 = scmp.eq.s32.totalorder %s28, 1
      %p217 = por %p215, %p216
      %p219 = scmp.ne.s32.totalorder %s204, %s218
      %p220 = scmp.eq.s32.totalorder %s28, 0
      %p221 = por %p219, %p220
      %s223 = sadd.s32 %s222, 1
      %p226 = scmp.eq.s32.totalorder %s22, 1
      %p227 = scmp.ne.s32.totalorder %s222, %s224
      %p228 = scmp.eq.s32.totalorder %s22, 0
      %p229 = por %p227, %p228
      %p230 = scmp.ne.s32.totalorder %s222, %s224
      %p231 = scmp.eq.s32.totalorder %s27, 1
      %p232 = por %p230, %p231
      %p233 = scmp.ne.s32.totalorder %s224, %s225
      %p234 = scmp.eq.s32.totalorder %s27, 0
      %p235 = por %p233, %p234
      %p236 = scmp.ne.s32.totalorder %s224, %s225
      %p237 = scmp.eq.s32.totalorder %s28, 1
      %p238 = por %p236, %p237
      %p240 = scmp.ne.s32.totalorder %s225, %s239
      %p241 = scmp.eq.s32.totalorder %s28, 0
      %p242 = por %p240, %p241
      %s243 = ssub.s32 %s30, %s37
      %p244 = scmp.eq.s32.totalorder %s243, 0
      %s246 = sadd.s32 %s245, 1
      %s247 = scalar_select %p244, %s245, %s246
      %p250 = pneg %p244
      %p251 = scmp.eq.s32.totalorder %s22, 1
      %p252 = por %p250, %p251
      %p253 = scmp.ne.s32.totalorder %s245, %s248
      %p254 = scmp.eq.s32.totalorder %s22, 0
      %p255 = por %p253, %p254
      %p256 = scmp.ne.s32.totalorder %s245, %s248
      %p257 = scmp.eq.s32.totalorder %s27, 1
      %p258 = por %p256, %p257
      %p259 = scmp.ne.s32.totalorder %s248, %s249
      %p260 = scmp.eq.s32.totalorder %s27, 0
      %p261 = por %p259, %p260
      %p262 = scmp.ne.s32.totalorder %s248, %s249
      %p263 = scmp.eq.s32.totalorder %s28, 1
      %p264 = por %p262, %p263
      %p266 = scmp.ne.s32.totalorder %s249, %s265
      %p267 = scmp.eq.s32.totalorder %s28, 0
      %p268 = por %p266, %p267
      %s270 = sadd.s32 %s269, 1
      %p273 = scmp.eq.s32.totalorder %s22, 1
      %p274 = scmp.ne.s32.totalorder %s269, %s271
      %p275 = scmp.eq.s32.totalorder %s22, 0
      %p276 = por %p274, %p275
      %p277 = scmp.ne.s32.totalorder %s269, %s271
      %p278 = scmp.eq.s32.totalorder %s27, 1
      %p279 = por %p277, %p278
      %p280 = scmp.ne.s32.totalorder %s271, %s272
      %p281 = scmp.eq.s32.totalorder %s27, 0
      %p282 = por %p280, %p281
      %p283 = scmp.ne.s32.totalorder %s271, %s272
      %p284 = scmp.eq.s32.totalorder %s28, 1
      %p285 = por %p283, %p284
      %p287 = scmp.ne.s32.totalorder %s272, %s286
      %p288 = scmp.eq.s32.totalorder %s28, 0
      %p289 = por %p287, %p288
      %s290 = ssub.s32 %s29, %s41
      %s291 = ssub.s32 %s30, %s37
      %s292 = sor.u32 %s290, %s291
      %p293 = scmp.eq.s32.totalorder %s292, 0
      %s295 = sadd.s32 %s294, 1
      %s296 = scalar_select %p293, %s294, %s295
      %p299 = pneg %p293
      %p300 = scmp.eq.s32.totalorder %s22, 1
      %p301 = por %p299, %p300
      %p302 = scmp.ne.s32.totalorder %s294, %s297
      %p303 = scmp.eq.s32.totalorder %s22, 0
      %p304 = por %p302, %p303
      %p305 = scmp.ne.s32.totalorder %s294, %s297
      %p306 = scmp.eq.s32.totalorder %s27, 1
      %p307 = por %p305, %p306
      %p308 = scmp.ne.s32.totalorder %s297, %s298
      %p309 = scmp.eq.s32.totalorder %s27, 0
      %p310 = por %p308, %p309
      %p311 = scmp.ne.s32.totalorder %s297, %s298
      %p312 = scmp.eq.s32.totalorder %s28, 1
      %p313 = por %p311, %p312
      %p315 = scmp.ne.s32.totalorder %s298, %s314
      %p316 = scmp.eq.s32.totalorder %s28, 0
      %p317 = por %p315, %p316
      %p318 = scmp.le.s32.totalorder 1, %s22
      %p319 = scmp.lt.s32.totalorder %s22, 3
      %p320 = pnand %p318, %p319
      %p321 = pneg %p320
      // Predicated region
      $region9: #{tpu_custom_call.1} parent=5 // pred_check
        _
      $region10: #{tpu_custom_call.1} parent=5 // pred_check_branch
        %323 = sbr.rel (%p320) target = $region12
      $region11: #{tpu_custom_call.1} parent=5 // pred_region
        %s324 = ssub.s32 %s22, 1
        // Predicated region
        $region13: #{tpu_custom_call.1} parent=11 // pred_check
          %p325 = pneg %p109
        $region14: #{tpu_custom_call.1} parent=11 // pred_check_branch
          %327 = sbr.rel (%p325) target = $region16
        $region15: #{tpu_custom_call.1} parent=11 // pred_region
          _
        $region16: #{tpu_custom_call.1} parent=11 // pred_fallthru
          _
        // Predicated region
        $region17: #{tpu_custom_call.1} parent=11 // pred_check
          %p328 = pneg %p130
        $region18: #{tpu_custom_call.1} parent=11 // pred_check_branch
          %330 = sbr.rel (%p328) target = $region20
        $region19: #{tpu_custom_call.1} parent=11 // pred_region
          _
        $region20: #{tpu_custom_call.1} parent=11 // pred_fallthru
          _
        // Predicated region
        $region21: #{tpu_custom_call.1} parent=11 // pred_check
          %p331 = pneg %p151
        $region22: #{tpu_custom_call.1} parent=11 // pred_check_branch
          %333 = sbr.rel (%p331) target = $region24
        $region23: #{tpu_custom_call.1} parent=11 // pred_region
          %s335 = ssub.s32 256, 256
          %336 = vsyncadd [#allocation3], %s335
          %s337 = sshll.u32 [#allocation2], 4
          %s338 = int_to_ptr.vmem [resolvable:$true] %s337
          %343 = dma.hbm_to_vmem [thread:$0]  %s4, 256, %s338, [#allocation3], 64, 64, 4
        $region24: #{tpu_custom_call.1} parent=11 // pred_fallthru
          _
        // Predicated region
        $region25: #{tpu_custom_call.1} parent=11 // pred_check
          %p344 = pneg %p172
        $region26: #{tpu_custom_call.1} parent=11 // pred_check_branch
          %346 = sbr.rel (%p344) target = $region28
        $region27: #{tpu_custom_call.1} parent=11 // pred_region
          %s348 = ssub.s32 256, 256
          %349 = vsyncadd [#allocation6], %s348
          %s350 = sshll.u32 [#allocation5], 4
          %s351 = int_to_ptr.vmem [resolvable:$true] %s350
          %356 = dma.hbm_to_vmem [thread:$0]  %s5, 256, %s351, [#allocation6], 64, 64, 4
        $region28: #{tpu_custom_call.1} parent=11 // pred_fallthru
          _
        // Predicated region
        $region29: #{tpu_custom_call.1} parent=11 // pred_check
          %p357 = pneg %p193
        $region30: #{tpu_custom_call.1} parent=11 // pred_check_branch
          %359 = sbr.rel (%p357) target = $region32
        $region31: #{tpu_custom_call.1} parent=11 // pred_region
          _
        $region32: #{tpu_custom_call.1} parent=11 // pred_fallthru
          _
        // Predicated region
        $region33: #{tpu_custom_call.1} parent=11 // pred_check
          %p360 = pneg %p214
        $region34: #{tpu_custom_call.1} parent=11 // pred_check_branch
          %362 = sbr.rel (%p360) target = $region36
        $region35: #{tpu_custom_call.1} parent=11 // pred_region
          _
        $region36: #{tpu_custom_call.1} parent=11 // pred_fallthru
          _
        // Predicated region
        $region37: #{tpu_custom_call.1} parent=11 // pred_check
          %p363 = pneg %p235
        $region38: #{tpu_custom_call.1} parent=11 // pred_check_branch
          %365 = sbr.rel (%p363) target = $region40
        $region39: #{tpu_custom_call.1} parent=11 // pred_region
          _
        $region40: #{tpu_custom_call.1} parent=11 // pred_fallthru
          _
        // Predicated region
        $region41: #{tpu_custom_call.1} parent=11 // pred_check
          %p366 = pneg %p261
        $region42: #{tpu_custom_call.1} parent=11 // pred_check_branch
          %368 = sbr.rel (%p366) target = $region44
        $region43: #{tpu_custom_call.1} parent=11 // pred_region
          %p369 = scmp.lt.s32.totalorder %s32, 0
          %s370 = scalar_select %p369, %s32, 0
          %s371 = smul.addr %s370, 8
          %s372 = scalar_lea.vmem %s9, %s371
        $region44: #{tpu_custom_call.1} parent=11 // pred_fallthru
          _
        // Predicated region
        $region45: #{tpu_custom_call.1} parent=11 // pred_check
          %p373 = pneg %p282
        $region46: #{tpu_custom_call.1} parent=11 // pred_check_branch
          %375 = sbr.rel (%p373) target = $region48
        $region47: #{tpu_custom_call.1} parent=11 // pred_region
          %s377 = ssub.s32 128, 128
          %378 = vsyncadd [#allocation6], %s377
          %s380 = sshll.u32 [#allocation7], 4
          %s381 = int_to_ptr.vmem [resolvable:$true] %s380
          %383 = dma.hbm_to_vmem [thread:$0]  %s10, 128, %s381, [#allocation6]
        $region48: #{tpu_custom_call.1} parent=11 // pred_fallthru
          _
      $region12: #{tpu_custom_call.1} parent=5 // pred_fallthru
        _
      %p384 = scmp.lt.s32.totalorder %s22, 2
      // Predicated region
      $region49: #{tpu_custom_call.1} parent=5 // pred_check
        %p385 = pneg %p384
      $region50: #{tpu_custom_call.1} parent=5 // pred_check_branch
        %387 = sbr.rel (%p385) target = $region52
      $region51: #{tpu_custom_call.1} parent=5 // pred_region
        // Predicated region
        $region53: #{tpu_custom_call.1} parent=51 // pred_check
          %p388 = pneg %p56
        $region54: #{tpu_custom_call.1} parent=51 // pred_check_branch
          %390 = sbr.rel (%p388) target = $region56
        $region55: #{tpu_custom_call.1} parent=51 // pred_region
          %p391 = scmp.lt.s32.totalorder %s29, 1
          %s392 = scalar_select %p391, %s29, 1
          %p393 = scmp.lt.s32.totalorder %s30, 0
          %s394 = scalar_select %p393, %s30, 0
          %s395 = sadd.s32 %s394, %s392
          %s396 = smul.addr %s395, 8
          %s397 = scalar_lea.vmem %s0, %s396
        $region56: #{tpu_custom_call.1} parent=51 // pred_fallthru
          _
        // Predicated region
        $region57: #{tpu_custom_call.1} parent=51 // pred_check
          %p398 = pneg %p82
        $region58: #{tpu_custom_call.1} parent=51 // pred_check_branch
          %400 = sbr.rel (%p398) target = $region60
        $region59: #{tpu_custom_call.1} parent=51 // pred_region
          %p401 = scmp.lt.s32.totalorder %s29, 1
          %s402 = scalar_select %p401, %s29, 1
          %s403 = smul.addr %s402, 8
          %s404 = scalar_lea.vmem %s1, %s403
        $region60: #{tpu_custom_call.1} parent=51 // pred_fallthru
          _
      $region52: #{tpu_custom_call.1} parent=5 // pred_fallthru
        _
      %p405 = scmp.le.s32.totalorder 1, %s22
      %p406 = scmp.lt.s32.totalorder %s22, 3
      %p407 = pnand %p405, %p406
      %p408 = pneg %p407
      // Predicated region
      $region61: #{tpu_custom_call.1} parent=5 // pred_check
        _
      $region62: #{tpu_custom_call.1} parent=5 // pred_check_branch
        %410 = sbr.rel (%p407) target = $region64
      $region63: #{tpu_custom_call.1} parent=5 // pred_region
        %s411 = ssub.s32 %s22, 1
        // Predicated region
        $region65: #{tpu_custom_call.1} parent=63 // pred_check
          %p412 = pneg %p151
        $region66: #{tpu_custom_call.1} parent=63 // pred_check_branch
          %414 = sbr.rel (%p412) target = $region68
        $region67: #{tpu_custom_call.1} parent=63 // pred_region
          %415 = dma.done [#allocation3], 256
        $region68: #{tpu_custom_call.1} parent=63 // pred_fallthru
          _
        // Predicated region
        $region69: #{tpu_custom_call.1} parent=63 // pred_check
          %p416 = pneg %p172
        $region70: #{tpu_custom_call.1} parent=63 // pred_check_branch
          %418 = sbr.rel (%p416) target = $region72
        $region71: #{tpu_custom_call.1} parent=63 // pred_region
          %419 = dma.done [#allocation6], 256
        $region72: #{tpu_custom_call.1} parent=63 // pred_fallthru
          _
        // Predicated region
        $region73: #{tpu_custom_call.1} parent=63 // pred_check
          %p420 = pneg %p282
        $region74: #{tpu_custom_call.1} parent=63 // pred_check_branch
          %422 = sbr.rel (%p420) target = $region76
        $region75: #{tpu_custom_call.1} parent=63 // pred_region
          %423 = dma.done [#allocation6], 128
        $region76: #{tpu_custom_call.1} parent=63 // pred_fallthru
          _
        %p424 = scmp.lt.s32.totalorder %s31, 1
        %s425 = scalar_select %p424, %s31, 1
        %p426 = scmp.lt.s32.totalorder %s32, 0
        %s427 = scalar_select %p426, %s32, 0
        %s428 = sadd.s32 %s427, %s425
        %s429 = smul.addr %s428, 8
        %s430 = scalar_lea.vmem %s0, %s429
        %p431 = pneg %p62
        %p432 = pneg %p59
        %p433 = scmp.lt.s32.totalorder %s31, 1
        %s434 = scalar_select %p433, %s31, 1
        %s435 = smul.addr %s434, 8
        %s436 = scalar_lea.vmem %s1, %s435
        %p437 = pneg %p88
        %p438 = pneg %p85
        %p439 = pneg %p109
        %p440 = pneg %p106
        %p441 = pneg %p130
        %p442 = pneg %p127
        %p443 = pneg %p151
        %p444 = pneg %p148
        %p445 = pneg %p172
        %p446 = pneg %p169
        %p447 = pneg %p193
        %p448 = pneg %p190
        %p449 = pneg %p214
        %p450 = pneg %p211
        %p451 = pneg %p235
        %p452 = pneg %p232
        %p453 = scmp.lt.s32.totalorder %s32, 0
        %s454 = scalar_select %p453, %s32, 0
        %s455 = smul.addr %s454, 8
        %s456 = scalar_lea.vmem %s9, %s455
        %p457 = pneg %p261
        %p458 = pneg %p258
        %p459 = pneg %p282
        %p460 = pneg %p279
        %p461 = pneg %p310
        %p462 = pneg %p307
        %s463 = sand.u32 %s297, 1
        %s464 = scalar_lea.sflag [#allocation4], %s463
        %s465 = sand.u32 %s297, 1
        %s466 = smul.addr %s465, 8
        %s467 = scalar_lea.vmem [#allocation8], %s466
        %p468 = scmp.lt.s32.totalorder %s31, 1
        %s469 = scalar_select %p468, %s31, 1
        %p470 = scmp.lt.s32.totalorder %s32, 0
        %s471 = scalar_select %p470, %s32, 0
        %s472 = sadd.s32 %s471, %s469
        %s473 = smul.addr %s472, 8
        %s474 = scalar_lea.vmem %s0, %s473
        %p475 = scmp.lt.s32.totalorder %s31, 1
        %s476 = scalar_select %p475, %s31, 1
        %s477 = smul.addr %s476, 8
        %s478 = scalar_lea.vmem %s1, %s477
        %p479 = scmp.lt.s32.totalorder %s32, 0
        %s480 = scalar_select %p479, %s32, 0
        %s481 = smul.addr %s480, 8
        %s482 = scalar_lea.vmem %s9, %s481
        %v484 = vld [vmem:[%s474] sm:$0xff]
        %v485 = vld [vmem:[%s478] sm:$0xff]
        %v486 = vld [vmem:[%s482] sm:$0xff]
        %v487 = vadd.f32 %v484, %v486
        %v488 = vld [vmem:[#allocation7] sm:$0xff]
        %v489 = vadd.f32 %v485, %v488
        %v490 = vpack.c.bf16 %v489, %v489
        %v491 = vld [vmem:[%s2] sm:$0xf]
        %v492 = vld [vmem:[%s2 + $0x4] sm:$0xf]
        %v493 = vld [vmem:[%s2 + $0x8] sm:$0xf]
        %v494 = vld [vmem:[%s2 + $0xc] sm:$0xf]
        %v495 = vld [vmem:[%s3] sm:$0x1]
        %v497 = vlaneseq
        %v498 = vshrl.u32 %v497, 7
        %v499 = vsub.s32 0, %v498
        %v500 = vrot.slane %v495, %v499
        %v506 = vunpack.c.l.b16 %v491
        %v507 = vunpack.c.l.b16 %v492
        %v508 = vunpack.c.l.b16 %v493
        %v509 = vunpack.c.l.b16 %v494
        %v510 = vpack.c.b16 %v507, %v506
        %v511 = vpack.c.b16 %v509, %v508
        %vm514 = vcmask 261120
        %v516 = vsel %vm514, %v490, 0
        %518 = vmatprep.subr.bf16.mxu0 0
        %519 = vmatpush1.bf16.msra.mxu0 %v510
        %520 = vmatprep.subr.bf16.mxu0 0
        %521 = vmatpush1.bf16.msra.mxu0 %v511
        %522 = vmatprep.subr.bf16.mxu0 0
        %523 = vmatpush1.bf16.msra.mxu0 0
        %524 = vmatprep.subr.bf16.mxu0 0
        %525 = vmatpush1.bf16.msra.mxu0 0
        %526 = vmatprep.subr.bf16.mxu0 0
        %527 = vmatpush1.bf16.msra.mxu0 0
        %528 = vmatprep.subr.bf16.mxu0 0
        %529 = vmatpush1.bf16.msra.mxu0 0
        %530 = vmatprep.subr.bf16.mxu0 0
        %531 = vmatpush1.bf16.msra.mxu0 0
        %532 = vmatprep.subr.bf16.mxu0 0
        %533 = vmatpush1.bf16.msra.mxu0 0
        %534 = vmatprep.subr.bf16.mxu0 0
        %535 = vmatpush1.bf16.msra.mxu0 0
        %536 = vmatprep.subr.bf16.mxu0 0
        %537 = vmatpush1.bf16.msra.mxu0 0
        %538 = vmatprep.subr.bf16.mxu0 0
        %539 = vmatpush1.bf16.msra.mxu0 0
        %540 = vmatprep.subr.bf16.mxu0 0
        %541 = vmatpush1.bf16.msra.mxu0 0
        %542 = vmatprep.subr.bf16.mxu0 0
        %543 = vmatpush1.bf16.msra.mxu0 0
        %544 = vmatprep.subr.bf16.mxu0 0
        %545 = vmatpush1.bf16.msra.mxu0 0
        %546 = vmatprep.subr.bf16.mxu0 0
        %547 = vmatpush1.bf16.msra.mxu0 0
        %548 = vmatprep.subr.bf16.mxu0 0
        %549 = vmatpush1.bf16.msra.mxu0 0
        %550 = vmatprep.mubr.bf16.mxu0 0
        %551 = vmatmul.mubr.bf16.gmra.mrb[0].mxu0 %v516
        %v552 = vpop.f32.mrb[0].mxu0
        %v553 = vadd.f32 %v500, %v552
        %v554 = vpop.f32.mrb[0].mxu0
        %v555 = vpop.f32.mrb[0].mxu0
        %v556 = vpop.f32.mrb[0].mxu0
        %557 = vdwg.mxu0
        %v558 = vmul.f32 %v553, 0.35355338
        %560 = vrot.lane.b32.xlu0 %v558, 120
        %v561 = vpop.permute.xlu0 %560
        %563 = vrot.lane.b32.xlu0 %v558, 112
        %v564 = vpop.permute.xlu0 %563
        %566 = vrot.lane.b32.xlu0 %v558, 104
        %v567 = vpop.permute.xlu0 %566
        %v569 = vcombine.low %v558, %v564
        %v570 = vcombine.high %v558, %v564
        %v572 = vunpack.c.l.s4 1983009808
        %v573 = vunpack.c.0.s8 %v572
        %v574 = vlaneseq
        %v575 = vshrl.u32 %v574, 7
        %v576 = vsub.s32 %v573, %v575
        %v577 = vrot.slane %v569, %v576
        %v579 = vunpack.c.l.s4 1983009808
        %v580 = vunpack.c.0.s8 %v579
        %v581 = vlaneseq
        %v582 = vshrl.u32 %v581, 7
        %v583 = vsub.s32 %v580, %v582
        %v584 = vrot.slane %v570, %v583
        %v585 = vcombine.low %v561, %v567
        %v586 = vcombine.high %v561, %v567
        %v588 = vunpack.c.l.s4 1983009808
        %v589 = vunpack.c.0.s8 %v588
        %v590 = vlaneseq
        %v591 = vshrl.u32 %v590, 7
        %v592 = vsub.s32 %v589, %v591
        %v593 = vrot.slane %v585, %v592
        %v595 = vunpack.c.l.s4 1983009808
        %v596 = vunpack.c.0.s8 %v595
        %v597 = vlaneseq
        %v598 = vshrl.u32 %v597, 7
        %v599 = vsub.s32 %v596, %v598
        %v600 = vrot.slane %v586, %v599
        %v601 = vcombine.low %v577, %v593
        %v602 = vcombine.high %v577, %v593
        %v604 = vunpack.c.l.s4 1934713408
        %v605 = vunpack.c.0.s8 %v604
        %v606 = vlaneseq
        %v607 = vshrl.u32 %v606, 7
        %v608 = vsub.s32 %v605, %v607
        %v609 = vrot.slane %v601, %v608
        %v611 = vunpack.c.l.s4 1934713408
        %v612 = vunpack.c.0.s8 %v611
        %v613 = vlaneseq
        %v614 = vshrl.u32 %v613, 7
        %v615 = vsub.s32 %v612, %v614
        %v616 = vrot.slane %v602, %v615
        %v617 = vcombine.low %v584, %v600
        %v618 = vcombine.high %v584, %v600
        %v620 = vunpack.c.l.s4 1934713408
        %v621 = vunpack.c.0.s8 %v620
        %v622 = vlaneseq
        %v623 = vshrl.u32 %v622, 7
        %v624 = vsub.s32 %v621, %v623
        %v625 = vrot.slane %v617, %v624
        %v627 = vunpack.c.l.s4 1934713408
        %v628 = vunpack.c.0.s8 %v627
        %v629 = vlaneseq
        %v630 = vshrl.u32 %v629, 7
        %v631 = vsub.s32 %v628, %v630
        %v632 = vrot.slane %v618, %v631
        %v633 = vcombine.high %v609, 0.0
        %v634 = vcombine.high %v616, 0.0
        %v635 = vcombine.high %v625, 0.0
        %v636 = vcombine.high %v632, 0.0
        %v637 = vpack.c.bf16 %v609, %v609
        %v638 = vpack.c.bf16 %v633, %v633
        %v639 = vpack.c.bf16 %v616, %v616
        %v640 = vpack.c.bf16 %v634, %v634
        %v641 = vpack.c.bf16 %v625, %v625
        %v642 = vpack.c.bf16 %v635, %v635
        %v643 = vpack.c.bf16 %v632, %v632
        %v644 = vpack.c.bf16 %v636, %v636
        %646 = vrot.lane.b32.xlu0 %v553, 120
        %v647 = vpop.permute.xlu0 %646
        %648 = vrot.lane.b32.xlu0 %v553, 112
        %v649 = vpop.permute.xlu0 %648
        %650 = vrot.lane.b32.xlu0 %v553, 104
        %v651 = vpop.permute.xlu0 %650
        %652 = vrot.lane.b32.xlu0 %v553, 96
        %v653 = vpop.permute.xlu0 %652
        %654 = vrot.lane.b32.xlu0 %v647, 96
        %v655 = vpop.permute.xlu0 %654
        %656 = vrot.lane.b32.xlu0 %v649, 96
        %v657 = vpop.permute.xlu0 %656
        %658 = vrot.lane.b32.xlu0 %v651, 96
        %v659 = vpop.permute.xlu0 %658
        %v664 = vcombine.low %v653, %v657
        %v665 = vcombine.high %v653, %v657
        %v667 = vunpack.c.l.s4 1983009808
        %v668 = vunpack.c.0.s8 %v667
        %v669 = vlaneseq
        %v670 = vshrl.u32 %v669, 7
        %v671 = vsub.s32 %v668, %v670
        %v672 = vrot.slane %v664, %v671
        %v674 = vunpack.c.l.s4 1983009808
        %v675 = vunpack.c.0.s8 %v674
        %v676 = vlaneseq
        %v677 = vshrl.u32 %v676, 7
        %v678 = vsub.s32 %v675, %v677
        %v679 = vrot.slane %v665, %v678
        %v680 = vcombine.low %v655, %v659
        %v681 = vcombine.high %v655, %v659
        %v683 = vunpack.c.l.s4 1983009808
        %v684 = vunpack.c.0.s8 %v683
        %v685 = vlaneseq
        %v686 = vshrl.u32 %v685, 7
        %v687 = vsub.s32 %v684, %v686
        %v688 = vrot.slane %v680, %v687
        %v690 = vunpack.c.l.s4 1983009808
        %v691 = vunpack.c.0.s8 %v690
        %v692 = vlaneseq
        %v693 = vshrl.u32 %v692, 7
        %v694 = vsub.s32 %v691, %v693
        %v695 = vrot.slane %v681, %v694
        %v696 = vcombine.low %v672, %v688
        %v697 = vcombine.high %v672, %v688
        %v699 = vunpack.c.l.s4 1934713408
        %v700 = vunpack.c.0.s8 %v699
        %v701 = vlaneseq
        %v702 = vshrl.u32 %v701, 7
        %v703 = vsub.s32 %v700, %v702
        %v704 = vrot.slane %v696, %v703
        %v706 = vunpack.c.l.s4 1934713408
        %v707 = vunpack.c.0.s8 %v706
        %v708 = vlaneseq
        %v709 = vshrl.u32 %v708, 7
        %v710 = vsub.s32 %v707, %v709
        %v711 = vrot.slane %v697, %v710
        %v712 = vcombine.low %v679, %v695
        %v713 = vcombine.high %v679, %v695
        %v715 = vunpack.c.l.s4 1934713408
        %v716 = vunpack.c.0.s8 %v715
        %v717 = vlaneseq
        %v718 = vshrl.u32 %v717, 7
        %v719 = vsub.s32 %v716, %v718
        %v720 = vrot.slane %v712, %v719
        %v722 = vunpack.c.l.s4 1934713408
        %v723 = vunpack.c.0.s8 %v722
        %v724 = vlaneseq
        %v725 = vshrl.u32 %v724, 7
        %v726 = vsub.s32 %v723, %v725
        %v727 = vrot.slane %v713, %v726
        %v728 = vcombine.high %v704, 0.0
        %v729 = vcombine.high %v711, 0.0
        %v730 = vcombine.high %v720, 0.0
        %v731 = vcombine.high %v727, 0.0
        %v732 = vpack.c.bf16 %v704, %v704
        %v733 = vpack.c.bf16 %v728, %v728
        %v734 = vpack.c.bf16 %v711, %v711
        %v735 = vpack.c.bf16 %v729, %v729
        %v736 = vpack.c.bf16 %v720, %v720
        %v737 = vpack.c.bf16 %v730, %v730
        %v738 = vpack.c.bf16 %v727, %v727
        %v739 = vpack.c.bf16 %v731, %v731
        %740 = vrot.lane.b32.xlu0 %v553, 64
        %v741 = vpop.permute.xlu0 %740
        %742 = vrot.lane.b32.xlu0 %v647, 64
        %v743 = vpop.permute.xlu0 %742
        %744 = vrot.lane.b32.xlu0 %v649, 64
        %v745 = vpop.permute.xlu0 %744
        %746 = vrot.lane.b32.xlu0 %v651, 64
        %v747 = vpop.permute.xlu0 %746
        %v752 = vcombine.low %v741, %v745
        %v753 = vcombine.high %v741, %v745
        %v755 = vunpack.c.l.s4 1983009808
        %v756 = vunpack.c.0.s8 %v755
        %v757 = vlaneseq
        %v758 = vshrl.u32 %v757, 7
        %v759 = vsub.s32 %v756, %v758
        %v760 = vrot.slane %v752, %v759
        %v762 = vunpack.c.l.s4 1983009808
        %v763 = vunpack.c.0.s8 %v762
        %v764 = vlaneseq
        %v765 = vshrl.u32 %v764, 7
        %v766 = vsub.s32 %v763, %v765
        %v767 = vrot.slane %v753, %v766
        %v768 = vcombine.low %v743, %v747
        %v769 = vcombine.high %v743, %v747
        %v771 = vunpack.c.l.s4 1983009808
        %v772 = vunpack.c.0.s8 %v771
        %v773 = vlaneseq
        %v774 = vshrl.u32 %v773, 7
        %v775 = vsub.s32 %v772, %v774
        %v776 = vrot.slane %v768, %v775
        %v778 = vunpack.c.l.s4 1983009808
        %v779 = vunpack.c.0.s8 %v778
        %v780 = vlaneseq
        %v781 = vshrl.u32 %v780, 7
        %v782 = vsub.s32 %v779, %v781
        %v783 = vrot.slane %v769, %v782
        %v784 = vcombine.low %v760, %v776
        %v785 = vcombine.high %v760, %v776
        %v787 = vunpack.c.l.s4 1934713408
        %v788 = vunpack.c.0.s8 %v787
        %v789 = vlaneseq
        %v790 = vshrl.u32 %v789, 7
        %v791 = vsub.s32 %v788, %v790
        %v792 = vrot.slane %v784, %v791
        %v794 = vunpack.c.l.s4 1934713408
        %v795 = vunpack.c.0.s8 %v794
        %v796 = vlaneseq
        %v797 = vshrl.u32 %v796, 7
        %v798 = vsub.s32 %v795, %v797
        %v799 = vrot.slane %v785, %v798
        %v800 = vcombine.low %v767, %v783
        %v801 = vcombine.high %v767, %v783
        %v803 = vunpack.c.l.s4 1934713408
        %v804 = vunpack.c.0.s8 %v803
        %v805 = vlaneseq
        %v806 = vshrl.u32 %v805, 7
        %v807 = vsub.s32 %v804, %v806
        %v808 = vrot.slane %v800, %v807
        %v810 = vunpack.c.l.s4 1934713408
        %v811 = vunpack.c.0.s8 %v810
        %v812 = vlaneseq
        %v813 = vshrl.u32 %v812, 7
        %v814 = vsub.s32 %v811, %v813
        %v815 = vrot.slane %v801, %v814
        %v816 = vcombine.high %v792, 0.0
        %v817 = vcombine.high %v799, 0.0
        %v818 = vcombine.high %v808, 0.0
        %v819 = vcombine.high %v815, 0.0
        %v820 = vpack.c.bf16 %v792, %v792
        %v821 = vpack.c.bf16 %v816, %v816
        %v822 = vpack.c.bf16 %v799, %v799
        %v823 = vpack.c.bf16 %v817, %v817
        %v824 = vpack.c.bf16 %v808, %v808
        %v825 = vpack.c.bf16 %v818, %v818
        %v826 = vpack.c.bf16 %v815, %v815
        %v827 = vpack.c.bf16 %v819, %v819
        %v828 = vcombine.low %v637, %v641
        %v830 = vunpack.c.l.s4 1983009808
        %v831 = vunpack.c.0.s8 %v830
        %v832 = vlaneseq
        %v833 = vshrl.u32 %v832, 7
        %v834 = vsub.s32 %v831, %v833
        %v835 = vrot.slane %v828, %v834
        %v836 = vcombine.low %v639, %v643
        %v838 = vunpack.c.l.s4 1983009808
        %v839 = vunpack.c.0.s8 %v838
        %v840 = vlaneseq
        %v841 = vshrl.u32 %v840, 7
        %v842 = vsub.s32 %v839, %v841
        %v843 = vrot.slane %v836, %v842
        %v844 = vcombine.low %v835, %v843
        %v846 = vunpack.c.l.s4 1934713408
        %v847 = vunpack.c.0.s8 %v846
        %v848 = vlaneseq
        %v849 = vshrl.u32 %v848, 7
        %v850 = vsub.s32 %v847, %v849
        %v851 = vrot.slane %v844, %v850
        %v852 = vcombine.high %v851, 0
        %v853 = vcombine.low %v638, %v642
        %v855 = vunpack.c.l.s4 1983009808
        %v856 = vunpack.c.0.s8 %v855
        %v857 = vlaneseq
        %v858 = vshrl.u32 %v857, 7
        %v859 = vsub.s32 %v856, %v858
        %v860 = vrot.slane %v853, %v859
        %v861 = vcombine.low %v640, %v644
        %v863 = vunpack.c.l.s4 1983009808
        %v864 = vunpack.c.0.s8 %v863
        %v865 = vlaneseq
        %v866 = vshrl.u32 %v865, 7
        %v867 = vsub.s32 %v864, %v866
        %v868 = vrot.slane %v861, %v867
        %v869 = vcombine.low %v860, %v868
        %v871 = vunpack.c.l.s4 1934713408
        %v872 = vunpack.c.0.s8 %v871
        %v873 = vlaneseq
        %v874 = vshrl.u32 %v873, 7
        %v875 = vsub.s32 %v872, %v874
        %v876 = vrot.slane %v869, %v875
        %v877 = vcombine.high %v876, 0
        %v880 = vpack.i.b16 %v876, %v851
        %v881 = vshrl.u32 %v851, 16
        %v882 = vshrl.u32 %v876, 16
        %v883 = vpack.i.b16 %v882, %v881
        %v886 = vpack.i.b16 %v877, %v852
        %v887 = vshrl.u32 %v852, 16
        %v888 = vshrl.u32 %v877, 16
        %v889 = vpack.i.b16 %v888, %v887
        %890 = vxpose.xlu0.c.b16.start [1/8] %v732, 128
        %891 = vxpose.xlu0.c.b16.cont [2/8] 0, 128
        %892 = vxpose.xlu0.c.b16.cont [3/8] 0, 128
        %893 = vxpose.xlu0.c.b16.cont [4/8] 0, 128
        %894 = vxpose.xlu0.c.b16.cont [5/8] 0, 128
        %895 = vxpose.xlu0.c.b16.cont [6/8] 0, 128
        %896 = vxpose.xlu0.c.b16.cont [7/8] 0, 128
        %897 = vxpose.xlu0.c.b16.end [8/8] 0, 128
        %v898 = vpop.trf.xlu0
        %v899 = vpop.trf.xlu0
        %v900 = vpop.trf.xlu0
        %v901 = vpop.trf.xlu0
        %v902 = vpop.trf.xlu0
        %v903 = vpop.trf.xlu0
        %v904 = vpop.trf.xlu0
        %v905 = vpop.trf.xlu0
        %906 = vxpose.xlu0.c.b16.start [1/8] %v733, 128
        %907 = vxpose.xlu0.c.b16.cont [2/8] 0, 128
        %908 = vxpose.xlu0.c.b16.cont [3/8] 0, 128
        %909 = vxpose.xlu0.c.b16.cont [4/8] 0, 128
        %910 = vxpose.xlu0.c.b16.cont [5/8] 0, 128
        %911 = vxpose.xlu0.c.b16.cont [6/8] 0, 128
        %912 = vxpose.xlu0.c.b16.cont [7/8] 0, 128
        %913 = vxpose.xlu0.c.b16.end [8/8] 0, 128
        %v914 = vpop.trf.xlu0
        %v915 = vpop.trf.xlu0
        %v916 = vpop.trf.xlu0
        %v917 = vpop.trf.xlu0
        %v918 = vpop.trf.xlu0
        %v919 = vpop.trf.xlu0
        %v920 = vpop.trf.xlu0
        %v921 = vpop.trf.xlu0
        %922 = vxpose.xlu0.c.b16.start [1/8] %v734, 128
        %923 = vxpose.xlu0.c.b16.cont [2/8] 0, 128
        %924 = vxpose.xlu0.c.b16.cont [3/8] 0, 128
        %925 = vxpose.xlu0.c.b16.cont [4/8] 0, 128
        %926 = vxpose.xlu0.c.b16.cont [5/8] 0, 128
        %927 = vxpose.xlu0.c.b16.cont [6/8] 0, 128
        %928 = vxpose.xlu0.c.b16.cont [7/8] 0, 128
        %929 = vxpose.xlu0.c.b16.end [8/8] 0, 128
        %v930 = vpop.trf.xlu0
        %v931 = vpop.trf.xlu0
        %v932 = vpop.trf.xlu0
        %v933 = vpop.trf.xlu0
        %v934 = vpop.trf.xlu0
        %v935 = vpop.trf.xlu0
        %v936 = vpop.trf.xlu0
        %v937 = vpop.trf.xlu0
        %938 = vxpose.xlu0.c.b16.start [1/8] %v735, 128
        %939 = vxpose.xlu0.c.b16.cont [2/8] 0, 128
        %940 = vxpose.xlu0.c.b16.cont [3/8] 0, 128
        %941 = vxpose.xlu0.c.b16.cont [4/8] 0, 128
        %942 = vxpose.xlu0.c.b16.cont [5/8] 0, 128
        %943 = vxpose.xlu0.c.b16.cont [6/8] 0, 128
        %944 = vxpose.xlu0.c.b16.cont [7/8] 0, 128
        %945 = vxpose.xlu0.c.b16.end [8/8] 0, 128
        %v946 = vpop.trf.xlu0
        %v947 = vpop.trf.xlu0
        %v948 = vpop.trf.xlu0
        %v949 = vpop.trf.xlu0
        %v950 = vpop.trf.xlu0
        %v951 = vpop.trf.xlu0
        %v952 = vpop.trf.xlu0
        %v953 = vpop.trf.xlu0
        %954 = vxpose.xlu0.c.b16.start [1/8] %v736, 128
        %955 = vxpose.xlu0.c.b16.cont [2/8] 0, 128
        %956 = vxpose.xlu0.c.b16.cont [3/8] 0, 128
        %957 = vxpose.xlu0.c.b16.cont [4/8] 0, 128
        %958 = vxpose.xlu0.c.b16.cont [5/8] 0, 128
        %959 = vxpose.xlu0.c.b16.cont [6/8] 0, 128
        %960 = vxpose.xlu0.c.b16.cont [7/8] 0, 128
        %961 = vxpose.xlu0.c.b16.end [8/8] 0, 128
        %v962 = vpop.trf.xlu0
        %v963 = vpop.trf.xlu0
        %v964 = vpop.trf.xlu0
        %v965 = vpop.trf.xlu0
        %v966 = vpop.trf.xlu0
        %v967 = vpop.trf.xlu0
        %v968 = vpop.trf.xlu0
        %v969 = vpop.trf.xlu0
        %970 = vxpose.xlu0.c.b16.start [1/8] %v737, 128
        %971 = vxpose.xlu0.c.b16.cont [2/8] 0, 128
        %972 = vxpose.xlu0.c.b16.cont [3/8] 0, 128
        %973 = vxpose.xlu0.c.b16.cont [4/8] 0, 128
        %974 = vxpose.xlu0.c.b16.cont [5/8] 0, 128
        %975 = vxpose.xlu0.c.b16.cont [6/8] 0, 128
        %976 = vxpose.xlu0.c.b16.cont [7/8] 0, 128
        %977 = vxpose.xlu0.c.b16.end [8/8] 0, 128
        %v978 = vpop.trf.xlu0
        %v979 = vpop.trf.xlu0
        %v980 = vpop.trf.xlu0
        %v981 = vpop.trf.xlu0
        %v982 = vpop.trf.xlu0
        %v983 = vpop.trf.xlu0
        %v984 = vpop.trf.xlu0
        %v985 = vpop.trf.xlu0
        %986 = vxpose.xlu0.c.b16.start [1/8] %v738, 128
        %987 = vxpose.xlu0.c.b16.cont [2/8] 0, 128
        %988 = vxpose.xlu0.c.b16.cont [3/8] 0, 128
        %989 = vxpose.xlu0.c.b16.cont [4/8] 0, 128
        %990 = vxpose.xlu0.c.b16.cont [5/8] 0, 128
        %991 = vxpose.xlu0.c.b16.cont [6/8] 0, 128
        %992 = vxpose.xlu0.c.b16.cont [7/8] 0, 128
        %993 = vxpose.xlu0.c.b16.end [8/8] 0, 128
        %v994 = vpop.trf.xlu0
        %v995 = vpop.trf.xlu0
        %v996 = vpop.trf.xlu0
        %v997 = vpop.trf.xlu0
        %v998 = vpop.trf.xlu0
        %v999 = vpop.trf.xlu0
        %v1000 = vpop.trf.xlu0
        %v1001 = vpop.trf.xlu0
        %1002 = vxpose.xlu0.c.b16.start [1/8] %v739, 128
        %1003 = vxpose.xlu0.c.b16.cont [2/8] 0, 128
        %1004 = vxpose.xlu0.c.b16.cont [3/8] 0, 128
        %1005 = vxpose.xlu0.c.b16.cont [4/8] 0, 128
        %1006 = vxpose.xlu0.c.b16.cont [5/8] 0, 128
        %1007 = vxpose.xlu0.c.b16.cont [6/8] 0, 128
        %1008 = vxpose.xlu0.c.b16.cont [7/8] 0, 128
        %1009 = vxpose.xlu0.c.b16.end [8/8] 0, 128
        %v1010 = vpop.trf.xlu0
        %v1011 = vpop.trf.xlu0
        %v1012 = vpop.trf.xlu0
        %v1013 = vpop.trf.xlu0
        %v1014 = vpop.trf.xlu0
        %v1015 = vpop.trf.xlu0
        %v1016 = vpop.trf.xlu0
        %v1017 = vpop.trf.xlu0
        %v1018 = vcombine.low %v898, %v962
        %v1020 = vunpack.c.l.s4 1983009808
        %v1021 = vunpack.c.0.s8 %v1020
        %v1022 = vlaneseq
        %v1023 = vshrl.u32 %v1022, 7
        %v1024 = vsub.s32 %v1021, %v1023
        %v1025 = vrot.slane %v1018, %v1024
        %v1026 = vcombine.low %v930, %v994
        %v1028 = vunpack.c.l.s4 1983009808
        %v1029 = vunpack.c.0.s8 %v1028
        %v1030 = vlaneseq
        %v1031 = vshrl.u32 %v1030, 7
        %v1032 = vsub.s32 %v1029, %v1031
        %v1033 = vrot.slane %v1026, %v1032
        %v1034 = vcombine.low %v1025, %v1033
        %v1035 = vcombine.high %v1025, %v1033
        %v1037 = vunpack.c.l.s4 1934713408
        %v1038 = vunpack.c.0.s8 %v1037
        %v1039 = vlaneseq
        %v1040 = vshrl.u32 %v1039, 7
        %v1041 = vsub.s32 %v1038, %v1040
        %v1042 = vrot.slane %v1034, %v1041
        %v1044 = vunpack.c.l.s4 1934713408
        %v1045 = vunpack.c.0.s8 %v1044
        %v1046 = vlaneseq
        %v1047 = vshrl.u32 %v1046, 7
        %v1048 = vsub.s32 %v1045, %v1047
        %v1049 = vrot.slane %v1035, %v1048
        %v1050 = vcombine.high %v1042, 0
        %v1051 = vcombine.high %v1049, 0
        %v1052 = vcombine.low %v914, %v978
        %v1054 = vunpack.c.l.s4 1983009808
        %v1055 = vunpack.c.0.s8 %v1054
        %v1056 = vlaneseq
        %v1057 = vshrl.u32 %v1056, 7
        %v1058 = vsub.s32 %v1055, %v1057
        %v1059 = vrot.slane %v1052, %v1058
        %v1060 = vcombine.low %v946, %v1010
        %v1062 = vunpack.c.l.s4 1983009808
        %v1063 = vunpack.c.0.s8 %v1062
        %v1064 = vlaneseq
        %v1065 = vshrl.u32 %v1064, 7
        %v1066 = vsub.s32 %v1063, %v1065
        %v1067 = vrot.slane %v1060, %v1066
        %v1068 = vcombine.low %v1059, %v1067
        %v1069 = vcombine.high %v1059, %v1067
        %v1071 = vunpack.c.l.s4 1934713408
        %v1072 = vunpack.c.0.s8 %v1071
        %v1073 = vlaneseq
        %v1074 = vshrl.u32 %v1073, 7
        %v1075 = vsub.s32 %v1072, %v1074
        %v1076 = vrot.slane %v1068, %v1075
        %v1078 = vunpack.c.l.s4 1934713408
        %v1079 = vunpack.c.0.s8 %v1078
        %v1080 = vlaneseq
        %v1081 = vshrl.u32 %v1080, 7
        %v1082 = vsub.s32 %v1079, %v1081
        %v1083 = vrot.slane %v1069, %v1082
        %v1084 = vcombine.high %v1076, 0
        %v1085 = vcombine.high %v1083, 0
        %v1088 = vpack.i.b16 %v1076, %v1042
        %v1090 = vshrl.u32 %v1042, 16
        %v1091 = vshrl.u32 %v1076, 16
        %v1092 = vpack.i.b16 %v1091, %v1090
        %v1096 = vpack.i.b16 %v1084, %v1050
        %v1098 = vshrl.u32 %v1050, 16
        %v1099 = vshrl.u32 %v1084, 16
        %v1100 = vpack.i.b16 %v1099, %v1098
        %v1104 = vpack.i.b16 %v1083, %v1049
        %v1106 = vshrl.u32 %v1049, 16
        %v1107 = vshrl.u32 %v1083, 16
        %v1108 = vpack.i.b16 %v1107, %v1106
        %v1112 = vpack.i.b16 %v1085, %v1051
        %v1114 = vshrl.u32 %v1051, 16
        %v1115 = vshrl.u32 %v1085, 16
        %v1116 = vpack.i.b16 %v1115, %v1114
        %1118 = vxpose.xlu0.c.b16.start [1/8] %v1088, 128
        %1119 = vxpose.xlu0.c.b16.cont [2/8] 0, 128
        %1120 = vxpose.xlu0.c.b16.cont [3/8] 0, 128
        %1121 = vxpose.xlu0.c.b16.cont [4/8] 0, 128
        %1122 = vxpose.xlu0.c.b16.cont [5/8] 0, 128
        %1123 = vxpose.xlu0.c.b16.cont [6/8] 0, 128
        %1124 = vxpose.xlu0.c.b16.cont [7/8] 0, 128
        %1125 = vxpose.xlu0.c.b16.end [8/8] 0, 128
        %v1126 = vpop.trf.xlu0
        %v1127 = vpop.trf.xlu0
        %v1128 = vpop.trf.xlu0
        %v1129 = vpop.trf.xlu0
        %v1130 = vpop.trf.xlu0
        %v1131 = vpop.trf.xlu0
        %v1132 = vpop.trf.xlu0
        %v1133 = vpop.trf.xlu0
        %1134 = vxpose.xlu0.c.b16.start [1/8] %v1092, 128
        %1135 = vxpose.xlu0.c.b16.cont [2/8] 0, 128
        %1136 = vxpose.xlu0.c.b16.cont [3/8] 0, 128
        %1137 = vxpose.xlu0.c.b16.cont [4/8] 0, 128
        %1138 = vxpose.xlu0.c.b16.cont [5/8] 0, 128
        %1139 = vxpose.xlu0.c.b16.cont [6/8] 0, 128
        %1140 = vxpose.xlu0.c.b16.cont [7/8] 0, 128
        %1141 = vxpose.xlu0.c.b16.end [8/8] 0, 128
        %v1142 = vpop.trf.xlu0
        %v1143 = vpop.trf.xlu0
        %v1144 = vpop.trf.xlu0
        %v1145 = vpop.trf.xlu0
        %v1146 = vpop.trf.xlu0
        %v1147 = vpop.trf.xlu0
        %v1148 = vpop.trf.xlu0
        %v1149 = vpop.trf.xlu0
        %1150 = vxpose.xlu0.c.b16.start [1/8] %v1096, 128
        %1151 = vxpose.xlu0.c.b16.cont [2/8] 0, 128
        %1152 = vxpose.xlu0.c.b16.cont [3/8] 0, 128
        %1153 = vxpose.xlu0.c.b16.cont [4/8] 0, 128
        %1154 = vxpose.xlu0.c.b16.cont [5/8] 0, 128
        %1155 = vxpose.xlu0.c.b16.cont [6/8] 0, 128
        %1156 = vxpose.xlu0.c.b16.cont [7/8] 0, 128
        %1157 = vxpose.xlu0.c.b16.end [8/8] 0, 128
        %v1158 = vpop.trf.xlu0
        %v1159 = vpop.trf.xlu0
        %v1160 = vpop.trf.xlu0
        %v1161 = vpop.trf.xlu0
        %v1162 = vpop.trf.xlu0
        %v1163 = vpop.trf.xlu0
        %v1164 = vpop.trf.xlu0
        %v1165 = vpop.trf.xlu0
        %1166 = vxpose.xlu0.c.b16.start [1/8] %v1100, 128
        %1167 = vxpose.xlu0.c.b16.cont [2/8] 0, 128
        %1168 = vxpose.xlu0.c.b16.cont [3/8] 0, 128
        %1169 = vxpose.xlu0.c.b16.cont [4/8] 0, 128
        %1170 = vxpose.xlu0.c.b16.cont [5/8] 0, 128
        %1171 = vxpose.xlu0.c.b16.cont [6/8] 0, 128
        %1172 = vxpose.xlu0.c.b16.cont [7/8] 0, 128
        %1173 = vxpose.xlu0.c.b16.end [8/8] 0, 128
        %v1174 = vpop.trf.xlu0
        %v1175 = vpop.trf.xlu0
        %v1176 = vpop.trf.xlu0
        %v1177 = vpop.trf.xlu0
        %v1178 = vpop.trf.xlu0
        %v1179 = vpop.trf.xlu0
        %v1180 = vpop.trf.xlu0
        %v1181 = vpop.trf.xlu0
        %1182 = vxpose.xlu0.c.b16.start [1/8] %v1104, 128
        %1183 = vxpose.xlu0.c.b16.cont [2/8] 0, 128
        %1184 = vxpose.xlu0.c.b16.cont [3/8] 0, 128
        %1185 = vxpose.xlu0.c.b16.cont [4/8] 0, 128
        %1186 = vxpose.xlu0.c.b16.cont [5/8] 0, 128
        %1187 = vxpose.xlu0.c.b16.cont [6/8] 0, 128
        %1188 = vxpose.xlu0.c.b16.cont [7/8] 0, 128
        %1189 = vxpose.xlu0.c.b16.end [8/8] 0, 128
        %v1190 = vpop.trf.xlu0
        %v1191 = vpop.trf.xlu0
        %v1192 = vpop.trf.xlu0
        %v1193 = vpop.trf.xlu0
        %v1194 = vpop.trf.xlu0
        %v1195 = vpop.trf.xlu0
        %v1196 = vpop.trf.xlu0
        %v1197 = vpop.trf.xlu0
        %1198 = vxpose.xlu0.c.b16.start [1/8] %v1108, 128
        %1199 = vxpose.xlu0.c.b16.cont [2/8] 0, 128
        %1200 = vxpose.xlu0.c.b16.cont [3/8] 0, 128
        %1201 = vxpose.xlu0.c.b16.cont [4/8] 0, 128
        %1202 = vxpose.xlu0.c.b16.cont [5/8] 0, 128
        %1203 = vxpose.xlu0.c.b16.cont [6/8] 0, 128
        %1204 = vxpose.xlu0.c.b16.cont [7/8] 0, 128
        %1205 = vxpose.xlu0.c.b16.end [8/8] 0, 128
        %v1206 = vpop.trf.xlu0
        %v1207 = vpop.trf.xlu0
        %v1208 = vpop.trf.xlu0
        %v1209 = vpop.trf.xlu0
        %v1210 = vpop.trf.xlu0
        %v1211 = vpop.trf.xlu0
        %v1212 = vpop.trf.xlu0
        %v1213 = vpop.trf.xlu0
        %1214 = vxpose.xlu0.c.b16.start [1/8] %v1112, 128
        %1215 = vxpose.xlu0.c.b16.cont [2/8] 0, 128
        %1216 = vxpose.xlu0.c.b16.cont [3/8] 0, 128
        %1217 = vxpose.xlu0.c.b16.cont [4/8] 0, 128
        %1218 = vxpose.xlu0.c.b16.cont [5/8] 0, 128
        %1219 = vxpose.xlu0.c.b16.cont [6/8] 0, 128
        %1220 = vxpose.xlu0.c.b16.cont [7/8] 0, 128
        %1221 = vxpose.xlu0.c.b16.end [8/8] 0, 128
        %v1222 = vpop.trf.xlu0
        %v1223 = vpop.trf.xlu0
        %v1224 = vpop.trf.xlu0
        %v1225 = vpop.trf.xlu0
        %v1226 = vpop.trf.xlu0
        %v1227 = vpop.trf.xlu0
        %v1228 = vpop.trf.xlu0
        %v1229 = vpop.trf.xlu0
        %1230 = vxpose.xlu0.c.b16.start [1/8] %v1116, 128
        %1231 = vxpose.xlu0.c.b16.cont [2/8] 0, 128
        %1232 = vxpose.xlu0.c.b16.cont [3/8] 0, 128
        %1233 = vxpose.xlu0.c.b16.cont [4/8] 0, 128
        %1234 = vxpose.xlu0.c.b16.cont [5/8] 0, 128
        %1235 = vxpose.xlu0.c.b16.cont [6/8] 0, 128
        %1236 = vxpose.xlu0.c.b16.cont [7/8] 0, 128
        %1237 = vxpose.xlu0.c.b16.end [8/8] 0, 128
        %v1238 = vpop.trf.xlu0
        %v1239 = vpop.trf.xlu0
        %v1240 = vpop.trf.xlu0
        %v1241 = vpop.trf.xlu0
        %v1242 = vpop.trf.xlu0
        %v1243 = vpop.trf.xlu0
        %v1244 = vpop.trf.xlu0
        %v1245 = vpop.trf.xlu0
        %v1246 = vcombine.low %v1126, %v1190
        %v1248 = vunpack.c.l.s4 1983009808
        %v1249 = vunpack.c.0.s8 %v1248
        %v1250 = vlaneseq
        %v1251 = vshrl.u32 %v1250, 7
        %v1252 = vsub.s32 %v1249, %v1251
        %v1253 = vrot.slane %v1246, %v1252
        %v1254 = vcombine.low %v1158, %v1222
        %v1256 = vunpack.c.l.s4 1983009808
        %v1257 = vunpack.c.0.s8 %v1256
        %v1258 = vlaneseq
        %v1259 = vshrl.u32 %v1258, 7
        %v1260 = vsub.s32 %v1257, %v1259
        %v1261 = vrot.slane %v1254, %v1260
        %v1262 = vcombine.low %v1253, %v1261
        %v1264 = vunpack.c.l.s4 1934713408
        %v1265 = vunpack.c.0.s8 %v1264
        %v1266 = vlaneseq
        %v1267 = vshrl.u32 %v1266, 7
        %v1268 = vsub.s32 %v1265, %v1267
        %v1269 = vrot.slane %v1262, %v1268
        %v1270 = vcombine.high %v1269, 0
        %v1271 = vcombine.low %v1142, %v1206
        %v1273 = vunpack.c.l.s4 1983009808
        %v1274 = vunpack.c.0.s8 %v1273
        %v1275 = vlaneseq
        %v1276 = vshrl.u32 %v1275, 7
        %v1277 = vsub.s32 %v1274, %v1276
        %v1278 = vrot.slane %v1271, %v1277
        %v1279 = vcombine.low %v1174, %v1238
        %v1281 = vunpack.c.l.s4 1983009808
        %v1282 = vunpack.c.0.s8 %v1281
        %v1283 = vlaneseq
        %v1284 = vshrl.u32 %v1283, 7
        %v1285 = vsub.s32 %v1282, %v1284
        %v1286 = vrot.slane %v1279, %v1285
        %v1287 = vcombine.low %v1278, %v1286
        %v1289 = vunpack.c.l.s4 1934713408
        %v1290 = vunpack.c.0.s8 %v1289
        %v1291 = vlaneseq
        %v1292 = vshrl.u32 %v1291, 7
        %v1293 = vsub.s32 %v1290, %v1292
        %v1294 = vrot.slane %v1287, %v1293
        %v1295 = vcombine.high %v1294, 0
        %v1298 = vpack.i.b16 %v1294, %v1269
        %v1299 = vshrl.u32 %v1269, 16
        %v1300 = vshrl.u32 %v1294, 16
        %v1301 = vpack.i.b16 %v1300, %v1299
        %v1304 = vpack.i.b16 %v1295, %v1270
        %v1305 = vshrl.u32 %v1270, 16
        %v1306 = vshrl.u32 %v1295, 16
        %v1307 = vpack.i.b16 %v1306, %v1305
        %vm1308 = vcmask 64512
        %v1310 = vsel %vm1308, %v880, 0
        %vm1312 = vcmask 1043456
        %v1314 = vsel %vm1312, %v1298, 0
        %1316 = vmatprep.subr.bf16.mxu0 0
        %1317 = vmatpush1.bf16.msra.mxu0 %v1314
        %1318 = vmatprep.subr.bf16.mxu0 0
        %1319 = vmatpush1.bf16.msra.mxu0 0
        %1320 = vmatprep.subr.bf16.mxu0 0
        %1321 = vmatpush1.bf16.msra.mxu0 0
        %1322 = vmatprep.subr.bf16.mxu0 0
        %1323 = vmatpush1.bf16.msra.mxu0 0
        %1324 = vmatprep.subr.bf16.mxu0 0
        %1325 = vmatpush1.bf16.msra.mxu0 0
        %1326 = vmatprep.subr.bf16.mxu0 0
        %1327 = vmatpush1.bf16.msra.mxu0 0
        %1328 = vmatprep.subr.bf16.mxu0 0
        %1329 = vmatpush1.bf16.msra.mxu0 0
        %1330 = vmatprep.subr.bf16.mxu0 0
        %1331 = vmatpush1.bf16.msra.mxu0 0
        %1332 = vmatprep.subr.bf16.mxu0 0
        %1333 = vmatpush1.bf16.msra.mxu0 0
        %1334 = vmatprep.subr.bf16.mxu0 0
        %1335 = vmatpush1.bf16.msra.mxu0 0
        %1336 = vmatprep.subr.bf16.mxu0 0
        %1337 = vmatpush1.bf16.msra.mxu0 0
        %1338 = vmatprep.subr.bf16.mxu0 0
        %1339 = vmatpush1.bf16.msra.mxu0 0
        %1340 = vmatprep.subr.bf16.mxu0 0
        %1341 = vmatpush1.bf16.msra.mxu0 0
        %1342 = vmatprep.subr.bf16.mxu0 0
        %1343 = vmatpush1.bf16.msra.mxu0 0
        %1344 = vmatprep.subr.bf16.mxu0 0
        %1345 = vmatpush1.bf16.msra.mxu0 0
        %1346 = vmatprep.subr.bf16.mxu0 0
        %1347 = vmatpush1.bf16.msra.mxu0 0
        %1348 = vmatprep.mubr.bf16.mxu0 0
        %1349 = vmatmul.mubr.bf16.gmra.mrb[0].mxu0 %v1310
        %v1350 = vpop.f32.mrb[0].mxu0
        %v1351 = vadd.f32 0.0, %v1350
        %v1352 = vpop.f32.mrb[0].mxu0
        %v1353 = vpop.f32.mrb[0].mxu0
        %v1354 = vpop.f32.mrb[0].mxu0
        %1355 = vdwg.mxu0
        %v1357 = vsel %vm1308, %v883, 0
        %v1360 = vsel %vm1312, %v1301, 0
        %1362 = vmatprep.subr.bf16.mxu0 0
        %1363 = vmatpush1.bf16.msra.mxu0 %v1360
        %1364 = vmatprep.subr.bf16.mxu0 0
        %1365 = vmatpush1.bf16.msra.mxu0 0
        %1366 = vmatprep.subr.bf16.mxu0 0
        %1367 = vmatpush1.bf16.msra.mxu0 0
        %1368 = vmatprep.subr.bf16.mxu0 0
        %1369 = vmatpush1.bf16.msra.mxu0 0
        %1370 = vmatprep.subr.bf16.mxu0 0
        %1371 = vmatpush1.bf16.msra.mxu0 0
        %1372 = vmatprep.subr.bf16.mxu0 0
        %1373 = vmatpush1.bf16.msra.mxu0 0
        %1374 = vmatprep.subr.bf16.mxu0 0
        %1375 = vmatpush1.bf16.msra.mxu0 0
        %1376 = vmatprep.subr.bf16.mxu0 0
        %1377 = vmatpush1.bf16.msra.mxu0 0
        %1378 = vmatprep.subr.bf16.mxu0 0
        %1379 = vmatpush1.bf16.msra.mxu0 0
        %1380 = vmatprep.subr.bf16.mxu0 0
        %1381 = vmatpush1.bf16.msra.mxu0 0
        %1382 = vmatprep.subr.bf16.mxu0 0
        %1383 = vmatpush1.bf16.msra.mxu0 0
        %1384 = vmatprep.subr.bf16.mxu0 0
        %1385 = vmatpush1.bf16.msra.mxu0 0
        %1386 = vmatprep.subr.bf16.mxu0 0
        %1387 = vmatpush1.bf16.msra.mxu0 0
        %1388 = vmatprep.subr.bf16.mxu0 0
        %1389 = vmatpush1.bf16.msra.mxu0 0
        %1390 = vmatprep.subr.bf16.mxu0 0
        %1391 = vmatpush1.bf16.msra.mxu0 0
        %1392 = vmatprep.subr.bf16.mxu0 0
        %1393 = vmatpush1.bf16.msra.mxu0 0
        %1394 = vmatprep.mubr.bf16.mxu0 0
        %1395 = vmatmul.mubr.bf16.gmra.mrb[0].mxu0 %v1357
        %v1396 = vpop.f32.mrb[0].mxu0
        %v1397 = vadd.f32 0.0, %v1396
        %v1398 = vpop.f32.mrb[0].mxu0
        %v1399 = vpop.f32.mrb[0].mxu0
        %v1400 = vpop.f32.mrb[0].mxu0
        %1401 = vdwg.mxu0
        %v1403 = vsel %vm1308, %v886, 0
        %v1406 = vsel %vm1312, %v1304, 0
        %1408 = vmatprep.subr.bf16.mxu0 0
        %1409 = vmatpush1.bf16.msra.mxu0 %v1406
        %1410 = vmatprep.subr.bf16.mxu0 0
        %1411 = vmatpush1.bf16.msra.mxu0 0
        %1412 = vmatprep.subr.bf16.mxu0 0
        %1413 = vmatpush1.bf16.msra.mxu0 0
        %1414 = vmatprep.subr.bf16.mxu0 0
        %1415 = vmatpush1.bf16.msra.mxu0 0
        %1416 = vmatprep.subr.bf16.mxu0 0
        %1417 = vmatpush1.bf16.msra.mxu0 0
        %1418 = vmatprep.subr.bf16.mxu0 0
        %1419 = vmatpush1.bf16.msra.mxu0 0
        %1420 = vmatprep.subr.bf16.mxu0 0
        %1421 = vmatpush1.bf16.msra.mxu0 0
        %1422 = vmatprep.subr.bf16.mxu0 0
        %1423 = vmatpush1.bf16.msra.mxu0 0
        %1424 = vmatprep.subr.bf16.mxu0 0
        %1425 = vmatpush1.bf16.msra.mxu0 0
        %1426 = vmatprep.subr.bf16.mxu0 0
        %1427 = vmatpush1.bf16.msra.mxu0 0
        %1428 = vmatprep.subr.bf16.mxu0 0
        %1429 = vmatpush1.bf16.msra.mxu0 0
        %1430 = vmatprep.subr.bf16.mxu0 0
        %1431 = vmatpush1.bf16.msra.mxu0 0
        %1432 = vmatprep.subr.bf16.mxu0 0
        %1433 = vmatpush1.bf16.msra.mxu0 0
        %1434 = vmatprep.subr.bf16.mxu0 0
        %1435 = vmatpush1.bf16.msra.mxu0 0
        %1436 = vmatprep.subr.bf16.mxu0 0
        %1437 = vmatpush1.bf16.msra.mxu0 0
        %1438 = vmatprep.subr.bf16.mxu0 0
        %1439 = vmatpush1.bf16.msra.mxu0 0
        %1440 = vmatprep.mubr.bf16.mxu0 0
        %1441 = vmatmul.mubr.bf16.gmra.mrb[0].mxu0 %v1403
        %v1442 = vpop.f32.mrb[0].mxu0
        %v1443 = vadd.f32 0.0, %v1442
        %v1444 = vpop.f32.mrb[0].mxu0
        %v1445 = vpop.f32.mrb[0].mxu0
        %v1446 = vpop.f32.mrb[0].mxu0
        %1447 = vdwg.mxu0
        %v1449 = vsel %vm1308, %v889, 0
        %v1452 = vsel %vm1312, %v1307, 0
        %1454 = vmatprep.subr.bf16.mxu0 0
        %1455 = vmatpush1.bf16.msra.mxu0 %v1452
        %1456 = vmatprep.subr.bf16.mxu0 0
        %1457 = vmatpush1.bf16.msra.mxu0 0
        %1458 = vmatprep.subr.bf16.mxu0 0
        %1459 = vmatpush1.bf16.msra.mxu0 0
        %1460 = vmatprep.subr.bf16.mxu0 0
        %1461 = vmatpush1.bf16.msra.mxu0 0
        %1462 = vmatprep.subr.bf16.mxu0 0
        %1463 = vmatpush1.bf16.msra.mxu0 0
        %1464 = vmatprep.subr.bf16.mxu0 0
        %1465 = vmatpush1.bf16.msra.mxu0 0
        %1466 = vmatprep.subr.bf16.mxu0 0
        %1467 = vmatpush1.bf16.msra.mxu0 0
        %1468 = vmatprep.subr.bf16.mxu0 0
        %1469 = vmatpush1.bf16.msra.mxu0 0
        %1470 = vmatprep.subr.bf16.mxu0 0
        %1471 = vmatpush1.bf16.msra.mxu0 0
        %1472 = vmatprep.subr.bf16.mxu0 0
        %1473 = vmatpush1.bf16.msra.mxu0 0
        %1474 = vmatprep.subr.bf16.mxu0 0
        %1475 = vmatpush1.bf16.msra.mxu0 0
        %1476 = vmatprep.subr.bf16.mxu0 0
        %1477 = vmatpush1.bf16.msra.mxu0 0
        %1478 = vmatprep.subr.bf16.mxu0 0
        %1479 = vmatpush1.bf16.msra.mxu0 0
        %1480 = vmatprep.subr.bf16.mxu0 0
        %1481 = vmatpush1.bf16.msra.mxu0 0
        %1482 = vmatprep.subr.bf16.mxu0 0
        %1483 = vmatpush1.bf16.msra.mxu0 0
        %1484 = vmatprep.subr.bf16.mxu0 0
        %1485 = vmatpush1.bf16.msra.mxu0 0
        %1486 = vmatprep.mubr.bf16.mxu0 0
        %1487 = vmatmul.mubr.bf16.gmra.mrb[0].mxu0 %v1449
        %v1488 = vpop.f32.mrb[0].mxu0
        %v1489 = vadd.f32 0.0, %v1488
        %v1490 = vpop.f32.mrb[0].mxu0
        %v1491 = vpop.f32.mrb[0].mxu0
        %v1492 = vpop.f32.mrb[0].mxu0
        %1493 = vdwg.mxu0
        %v1494 = vsel %vm1308, %v1351, -inf
        %1495 = vmax.xlane.f32.xlu0 %v1494
        %v1496 = vpop.xlane.xlu0 %1495
        %v1497 = vsel %vm1308, %v1397, -inf
        %1498 = vmax.xlane.f32.xlu0 %v1497
        %v1499 = vpop.xlane.xlu0 %1498
        %v1500 = vsel %vm1308, %v1443, -inf
        %1501 = vmax.xlane.f32.xlu0 %v1500
        %v1502 = vpop.xlane.xlu0 %1501
        %v1503 = vsel %vm1308, %v1489, -inf
        %1504 = vmax.xlane.f32.xlu0 %v1503
        %v1505 = vpop.xlane.xlu0 %1504
        %v1506 = vsub.f32 %v1351, %v1496
        %v1507 = vsub.f32 %v1397, %v1499
        %v1508 = vsub.f32 %v1443, %v1502
        %v1509 = vsub.f32 %v1489, %v1505
        %v1510 = vmul.f32 %v1506, 1.442695
        %v1511 = vpow.pop %v1510
        %v1512 = vmul.f32 %v1507, 1.442695
        %v1513 = vpow.pop %v1512
        %v1514 = vmul.f32 %v1508, 1.442695
        %v1515 = vpow.pop %v1514
        %v1516 = vmul.f32 %v1509, 1.442695
        %v1517 = vpow.pop %v1516
        %v1518 = vsel %vm1308, %v1511, 0.0
        %1519 = vadd.xlane.f32.xlu0 %v1518
        %v1520 = vpop.xlane.xlu0 %1519
        %v1521 = vsel %vm1308, %v1513, 0.0
        %1522 = vadd.xlane.f32.xlu0 %v1521
        %v1523 = vpop.xlane.xlu0 %1522
        %v1524 = vsel %vm1308, %v1515, 0.0
        %1525 = vadd.xlane.f32.xlu0 %v1524
        %v1526 = vpop.xlane.xlu0 %1525
        %v1527 = vsel %vm1308, %v1517, 0.0
        %1528 = vadd.xlane.f32.xlu0 %v1527
        %v1529 = vpop.xlane.xlu0 %1528
        %v1530 = vrcp.pop %v1520
        %v1531 = vrcp.pop %v1523
        %v1532 = vrcp.pop %v1526
        %v1533 = vrcp.pop %v1529
        %v1534 = vmul.f32 %v1511, %v1530
        %v1535 = vmul.f32 %v1513, %v1531
        %v1536 = vmul.f32 %v1515, %v1532
        %v1537 = vmul.f32 %v1517, %v1533
        %v1538 = vpack.c.bf16 %v1534, %v1534
        %v1539 = vpack.c.bf16 %v1535, %v1535
        %v1540 = vpack.c.bf16 %v1536, %v1536
        %v1541 = vpack.c.bf16 %v1537, %v1537
        %1542 = vxpose.xlu0.c.b16.start [1/8] %v820, 128
        %1543 = vxpose.xlu0.c.b16.cont [2/8] 0, 128
        %1544 = vxpose.xlu0.c.b16.cont [3/8] 0, 128
        %1545 = vxpose.xlu0.c.b16.cont [4/8] 0, 128
        %1546 = vxpose.xlu0.c.b16.cont [5/8] 0, 128
        %1547 = vxpose.xlu0.c.b16.cont [6/8] 0, 128
        %1548 = vxpose.xlu0.c.b16.cont [7/8] 0, 128
        %1549 = vxpose.xlu0.c.b16.end [8/8] 0, 128
        %v1550 = vpop.trf.xlu0
        %v1551 = vpop.trf.xlu0
        %v1552 = vpop.trf.xlu0
        %v1553 = vpop.trf.xlu0
        %v1554 = vpop.trf.xlu0
        %v1555 = vpop.trf.xlu0
        %v1556 = vpop.trf.xlu0
        %v1557 = vpop.trf.xlu0
        %1558 = vxpose.xlu0.c.b16.start [1/8] %v821, 128
        %1559 = vxpose.xlu0.c.b16.cont [2/8] 0, 128
        %1560 = vxpose.xlu0.c.b16.cont [3/8] 0, 128
        %1561 = vxpose.xlu0.c.b16.cont [4/8] 0, 128
        %1562 = vxpose.xlu0.c.b16.cont [5/8] 0, 128
        %1563 = vxpose.xlu0.c.b16.cont [6/8] 0, 128
        %1564 = vxpose.xlu0.c.b16.cont [7/8] 0, 128
        %1565 = vxpose.xlu0.c.b16.end [8/8] 0, 128
        %v1566 = vpop.trf.xlu0
        %v1567 = vpop.trf.xlu0
        %v1568 = vpop.trf.xlu0
        %v1569 = vpop.trf.xlu0
        %v1570 = vpop.trf.xlu0
        %v1571 = vpop.trf.xlu0
        %v1572 = vpop.trf.xlu0
        %v1573 = vpop.trf.xlu0
        %1574 = vxpose.xlu0.c.b16.start [1/8] %v822, 128
        %1575 = vxpose.xlu0.c.b16.cont [2/8] 0, 128
        %1576 = vxpose.xlu0.c.b16.cont [3/8] 0, 128
        %1577 = vxpose.xlu0.c.b16.cont [4/8] 0, 128
        %1578 = vxpose.xlu0.c.b16.cont [5/8] 0, 128
        %1579 = vxpose.xlu0.c.b16.cont [6/8] 0, 128
        %1580 = vxpose.xlu0.c.b16.cont [7/8] 0, 128
        %1581 = vxpose.xlu0.c.b16.end [8/8] 0, 128
        %v1582 = vpop.trf.xlu0
        %v1583 = vpop.trf.xlu0
        %v1584 = vpop.trf.xlu0
        %v1585 = vpop.trf.xlu0
        %v1586 = vpop.trf.xlu0
        %v1587 = vpop.trf.xlu0
        %v1588 = vpop.trf.xlu0
        %v1589 = vpop.trf.xlu0
        %1590 = vxpose.xlu0.c.b16.start [1/8] %v823, 128
        %1591 = vxpose.xlu0.c.b16.cont [2/8] 0, 128
        %1592 = vxpose.xlu0.c.b16.cont [3/8] 0, 128
        %1593 = vxpose.xlu0.c.b16.cont [4/8] 0, 128
        %1594 = vxpose.xlu0.c.b16.cont [5/8] 0, 128
        %1595 = vxpose.xlu0.c.b16.cont [6/8] 0, 128
        %1596 = vxpose.xlu0.c.b16.cont [7/8] 0, 128
        %1597 = vxpose.xlu0.c.b16.end [8/8] 0, 128
        %v1598 = vpop.trf.xlu0
        %v1599 = vpop.trf.xlu0
        %v1600 = vpop.trf.xlu0
        %v1601 = vpop.trf.xlu0
        %v1602 = vpop.trf.xlu0
        %v1603 = vpop.trf.xlu0
        %v1604 = vpop.trf.xlu0
        %v1605 = vpop.trf.xlu0
        %1606 = vxpose.xlu0.c.b16.start [1/8] %v824, 128
        %1607 = vxpose.xlu0.c.b16.cont [2/8] 0, 128
        %1608 = vxpose.xlu0.c.b16.cont [3/8] 0, 128
        %1609 = vxpose.xlu0.c.b16.cont [4/8] 0, 128
        %1610 = vxpose.xlu0.c.b16.cont [5/8] 0, 128
        %1611 = vxpose.xlu0.c.b16.cont [6/8] 0, 128
        %1612 = vxpose.xlu0.c.b16.cont [7/8] 0, 128
        %1613 = vxpose.xlu0.c.b16.end [8/8] 0, 128
        %v1614 = vpop.trf.xlu0
        %v1615 = vpop.trf.xlu0
        %v1616 = vpop.trf.xlu0
        %v1617 = vpop.trf.xlu0
        %v1618 = vpop.trf.xlu0
        %v1619 = vpop.trf.xlu0
        %v1620 = vpop.trf.xlu0
        %v1621 = vpop.trf.xlu0
        %1622 = vxpose.xlu0.c.b16.start [1/8] %v825, 128
        %1623 = vxpose.xlu0.c.b16.cont [2/8] 0, 128
        %1624 = vxpose.xlu0.c.b16.cont [3/8] 0, 128
        %1625 = vxpose.xlu0.c.b16.cont [4/8] 0, 128
        %1626 = vxpose.xlu0.c.b16.cont [5/8] 0, 128
        %1627 = vxpose.xlu0.c.b16.cont [6/8] 0, 128
        %1628 = vxpose.xlu0.c.b16.cont [7/8] 0, 128
        %1629 = vxpose.xlu0.c.b16.end [8/8] 0, 128
        %v1630 = vpop.trf.xlu0
        %v1631 = vpop.trf.xlu0
        %v1632 = vpop.trf.xlu0
        %v1633 = vpop.trf.xlu0
        %v1634 = vpop.trf.xlu0
        %v1635 = vpop.trf.xlu0
        %v1636 = vpop.trf.xlu0
        %v1637 = vpop.trf.xlu0
        %1638 = vxpose.xlu0.c.b16.start [1/8] %v826, 128
        %1639 = vxpose.xlu0.c.b16.cont [2/8] 0, 128
        %1640 = vxpose.xlu0.c.b16.cont [3/8] 0, 128
        %1641 = vxpose.xlu0.c.b16.cont [4/8] 0, 128
        %1642 = vxpose.xlu0.c.b16.cont [5/8] 0, 128
        %1643 = vxpose.xlu0.c.b16.cont [6/8] 0, 128
        %1644 = vxpose.xlu0.c.b16.cont [7/8] 0, 128
        %1645 = vxpose.xlu0.c.b16.end [8/8] 0, 128
        %v1646 = vpop.trf.xlu0
        %v1647 = vpop.trf.xlu0
        %v1648 = vpop.trf.xlu0
        %v1649 = vpop.trf.xlu0
        %v1650 = vpop.trf.xlu0
        %v1651 = vpop.trf.xlu0
        %v1652 = vpop.trf.xlu0
        %v1653 = vpop.trf.xlu0
        %1654 = vxpose.xlu0.c.b16.start [1/8] %v827, 128
        %1655 = vxpose.xlu0.c.b16.cont [2/8] 0, 128
        %1656 = vxpose.xlu0.c.b16.cont [3/8] 0, 128
        %1657 = vxpose.xlu0.c.b16.cont [4/8] 0, 128
        %1658 = vxpose.xlu0.c.b16.cont [5/8] 0, 128
        %1659 = vxpose.xlu0.c.b16.cont [6/8] 0, 128
        %1660 = vxpose.xlu0.c.b16.cont [7/8] 0, 128
        %1661 = vxpose.xlu0.c.b16.end [8/8] 0, 128
        %v1662 = vpop.trf.xlu0
        %v1663 = vpop.trf.xlu0
        %v1664 = vpop.trf.xlu0
        %v1665 = vpop.trf.xlu0
        %v1666 = vpop.trf.xlu0
        %v1667 = vpop.trf.xlu0
        %v1668 = vpop.trf.xlu0
        %v1669 = vpop.trf.xlu0
        %v1670 = vcombine.low %v1550, %v1614
        %v1672 = vunpack.c.l.s4 1983009808
        %v1673 = vunpack.c.0.s8 %v1672
        %v1674 = vlaneseq
        %v1675 = vshrl.u32 %v1674, 7
        %v1676 = vsub.s32 %v1673, %v1675
        %v1677 = vrot.slane %v1670, %v1676
        %v1678 = vcombine.low %v1582, %v1646
        %v1680 = vunpack.c.l.s4 1983009808
        %v1681 = vunpack.c.0.s8 %v1680
        %v1682 = vlaneseq
        %v1683 = vshrl.u32 %v1682, 7
        %v1684 = vsub.s32 %v1681, %v1683
        %v1685 = vrot.slane %v1678, %v1684
        %v1686 = vcombine.low %v1677, %v1685
        %v1687 = vcombine.high %v1677, %v1685
        %v1689 = vunpack.c.l.s4 1934713408
        %v1690 = vunpack.c.0.s8 %v1689
        %v1691 = vlaneseq
        %v1692 = vshrl.u32 %v1691, 7
        %v1693 = vsub.s32 %v1690, %v1692
        %v1694 = vrot.slane %v1686, %v1693
        %v1696 = vunpack.c.l.s4 1934713408
        %v1697 = vunpack.c.0.s8 %v1696
        %v1698 = vlaneseq
        %v1699 = vshrl.u32 %v1698, 7
        %v1700 = vsub.s32 %v1697, %v1699
        %v1701 = vrot.slane %v1687, %v1700
        %v1702 = vcombine.high %v1694, 0
        %v1703 = vcombine.high %v1701, 0
        %v1704 = vcombine.low %v1566, %v1630
        %v1706 = vunpack.c.l.s4 1983009808
        %v1707 = vunpack.c.0.s8 %v1706
        %v1708 = vlaneseq
        %v1709 = vshrl.u32 %v1708, 7
        %v1710 = vsub.s32 %v1707, %v1709
        %v1711 = vrot.slane %v1704, %v1710
        %v1712 = vcombine.low %v1598, %v1662
        %v1714 = vunpack.c.l.s4 1983009808
        %v1715 = vunpack.c.0.s8 %v1714
        %v1716 = vlaneseq
        %v1717 = vshrl.u32 %v1716, 7
        %v1718 = vsub.s32 %v1715, %v1717
        %v1719 = vrot.slane %v1712, %v1718
        %v1720 = vcombine.low %v1711, %v1719
        %v1721 = vcombine.high %v1711, %v1719
        %v1723 = vunpack.c.l.s4 1934713408
        %v1724 = vunpack.c.0.s8 %v1723
        %v1725 = vlaneseq
        %v1726 = vshrl.u32 %v1725, 7
        %v1727 = vsub.s32 %v1724, %v1726
        %v1728 = vrot.slane %v1720, %v1727
        %v1730 = vunpack.c.l.s4 1934713408
        %v1731 = vunpack.c.0.s8 %v1730
        %v1732 = vlaneseq
        %v1733 = vshrl.u32 %v1732, 7
        %v1734 = vsub.s32 %v1731, %v1733
        %v1735 = vrot.slane %v1721, %v1734
        %v1736 = vcombine.high %v1728, 0
        %v1737 = vcombine.high %v1735, 0
        %v1740 = vpack.i.b16 %v1728, %v1694
        %v1742 = vshrl.u32 %v1694, 16
        %v1743 = vshrl.u32 %v1728, 16
        %v1744 = vpack.i.b16 %v1743, %v1742
        %v1748 = vpack.i.b16 %v1736, %v1702
        %v1750 = vshrl.u32 %v1702, 16
        %v1751 = vshrl.u32 %v1736, 16
        %v1752 = vpack.i.b16 %v1751, %v1750
        %v1756 = vpack.i.b16 %v1735, %v1701
        %v1758 = vshrl.u32 %v1701, 16
        %v1759 = vshrl.u32 %v1735, 16
        %v1760 = vpack.i.b16 %v1759, %v1758
        %v1764 = vpack.i.b16 %v1737, %v1703
        %v1766 = vshrl.u32 %v1703, 16
        %v1767 = vshrl.u32 %v1737, 16
        %v1768 = vpack.i.b16 %v1767, %v1766
        %1770 = vxpose.xlu0.c.b16.start [1/8] %v1740, 128
        %1771 = vxpose.xlu0.c.b16.cont [2/8] 0, 128
        %1772 = vxpose.xlu0.c.b16.cont [3/8] 0, 128
        %1773 = vxpose.xlu0.c.b16.cont [4/8] 0, 128
        %1774 = vxpose.xlu0.c.b16.cont [5/8] 0, 128
        %1775 = vxpose.xlu0.c.b16.cont [6/8] 0, 128
        %1776 = vxpose.xlu0.c.b16.cont [7/8] 0, 128
        %1777 = vxpose.xlu0.c.b16.end [8/8] 0, 128
        %v1778 = vpop.trf.xlu0
        %v1779 = vpop.trf.xlu0
        %v1780 = vpop.trf.xlu0
        %v1781 = vpop.trf.xlu0
        %v1782 = vpop.trf.xlu0
        %v1783 = vpop.trf.xlu0
        %v1784 = vpop.trf.xlu0
        %v1785 = vpop.trf.xlu0
        %1786 = vxpose.xlu0.c.b16.start [1/8] %v1744, 128
        %1787 = vxpose.xlu0.c.b16.cont [2/8] 0, 128
        %1788 = vxpose.xlu0.c.b16.cont [3/8] 0, 128
        %1789 = vxpose.xlu0.c.b16.cont [4/8] 0, 128
        %1790 = vxpose.xlu0.c.b16.cont [5/8] 0, 128
        %1791 = vxpose.xlu0.c.b16.cont [6/8] 0, 128
        %1792 = vxpose.xlu0.c.b16.cont [7/8] 0, 128
        %1793 = vxpose.xlu0.c.b16.end [8/8] 0, 128
        %v1794 = vpop.trf.xlu0
        %v1795 = vpop.trf.xlu0
        %v1796 = vpop.trf.xlu0
        %v1797 = vpop.trf.xlu0
        %v1798 = vpop.trf.xlu0
        %v1799 = vpop.trf.xlu0
        %v1800 = vpop.trf.xlu0
        %v1801 = vpop.trf.xlu0
        %1802 = vxpose.xlu0.c.b16.start [1/8] %v1748, 128
        %1803 = vxpose.xlu0.c.b16.cont [2/8] 0, 128
        %1804 = vxpose.xlu0.c.b16.cont [3/8] 0, 128
        %1805 = vxpose.xlu0.c.b16.cont [4/8] 0, 128
        %1806 = vxpose.xlu0.c.b16.cont [5/8] 0, 128
        %1807 = vxpose.xlu0.c.b16.cont [6/8] 0, 128
        %1808 = vxpose.xlu0.c.b16.cont [7/8] 0, 128
        %1809 = vxpose.xlu0.c.b16.end [8/8] 0, 128
        %v1810 = vpop.trf.xlu0
        %v1811 = vpop.trf.xlu0
        %v1812 = vpop.trf.xlu0
        %v1813 = vpop.trf.xlu0
        %v1814 = vpop.trf.xlu0
        %v1815 = vpop.trf.xlu0
        %v1816 = vpop.trf.xlu0
        %v1817 = vpop.trf.xlu0
        %1818 = vxpose.xlu0.c.b16.start [1/8] %v1752, 128
        %1819 = vxpose.xlu0.c.b16.cont [2/8] 0, 128
        %1820 = vxpose.xlu0.c.b16.cont [3/8] 0, 128
        %1821 = vxpose.xlu0.c.b16.cont [4/8] 0, 128
        %1822 = vxpose.xlu0.c.b16.cont [5/8] 0, 128
        %1823 = vxpose.xlu0.c.b16.cont [6/8] 0, 128
        %1824 = vxpose.xlu0.c.b16.cont [7/8] 0, 128
        %1825 = vxpose.xlu0.c.b16.end [8/8] 0, 128
        %v1826 = vpop.trf.xlu0
        %v1827 = vpop.trf.xlu0
        %v1828 = vpop.trf.xlu0
        %v1829 = vpop.trf.xlu0
        %v1830 = vpop.trf.xlu0
        %v1831 = vpop.trf.xlu0
        %v1832 = vpop.trf.xlu0
        %v1833 = vpop.trf.xlu0
        %1834 = vxpose.xlu0.c.b16.start [1/8] %v1756, 128
        %1835 = vxpose.xlu0.c.b16.cont [2/8] 0, 128
        %1836 = vxpose.xlu0.c.b16.cont [3/8] 0, 128
        %1837 = vxpose.xlu0.c.b16.cont [4/8] 0, 128
        %1838 = vxpose.xlu0.c.b16.cont [5/8] 0, 128
        %1839 = vxpose.xlu0.c.b16.cont [6/8] 0, 128
        %1840 = vxpose.xlu0.c.b16.cont [7/8] 0, 128
        %1841 = vxpose.xlu0.c.b16.end [8/8] 0, 128
        %v1842 = vpop.trf.xlu0
        %v1843 = vpop.trf.xlu0
        %v1844 = vpop.trf.xlu0
        %v1845 = vpop.trf.xlu0
        %v1846 = vpop.trf.xlu0
        %v1847 = vpop.trf.xlu0
        %v1848 = vpop.trf.xlu0
        %v1849 = vpop.trf.xlu0
        %1850 = vxpose.xlu0.c.b16.start [1/8] %v1760, 128
        %1851 = vxpose.xlu0.c.b16.cont [2/8] 0, 128
        %1852 = vxpose.xlu0.c.b16.cont [3/8] 0, 128
        %1853 = vxpose.xlu0.c.b16.cont [4/8] 0, 128
        %1854 = vxpose.xlu0.c.b16.cont [5/8] 0, 128
        %1855 = vxpose.xlu0.c.b16.cont [6/8] 0, 128
        %1856 = vxpose.xlu0.c.b16.cont [7/8] 0, 128
        %1857 = vxpose.xlu0.c.b16.end [8/8] 0, 128
        %v1858 = vpop.trf.xlu0
        %v1859 = vpop.trf.xlu0
        %v1860 = vpop.trf.xlu0
        %v1861 = vpop.trf.xlu0
        %v1862 = vpop.trf.xlu0
        %v1863 = vpop.trf.xlu0
        %v1864 = vpop.trf.xlu0
        %v1865 = vpop.trf.xlu0
        %1866 = vxpose.xlu0.c.b16.start [1/8] %v1764, 128
        %1867 = vxpose.xlu0.c.b16.cont [2/8] 0, 128
        %1868 = vxpose.xlu0.c.b16.cont [3/8] 0, 128
        %1869 = vxpose.xlu0.c.b16.cont [4/8] 0, 128
        %1870 = vxpose.xlu0.c.b16.cont [5/8] 0, 128
        %1871 = vxpose.xlu0.c.b16.cont [6/8] 0, 128
        %1872 = vxpose.xlu0.c.b16.cont [7/8] 0, 128
        %1873 = vxpose.xlu0.c.b16.end [8/8] 0, 128
        %v1874 = vpop.trf.xlu0
        %v1875 = vpop.trf.xlu0
        %v1876 = vpop.trf.xlu0
        %v1877 = vpop.trf.xlu0
        %v1878 = vpop.trf.xlu0
        %v1879 = vpop.trf.xlu0
        %v1880 = vpop.trf.xlu0
        %v1881 = vpop.trf.xlu0
        %1882 = vxpose.xlu0.c.b16.start [1/8] %v1768, 128
        %1883 = vxpose.xlu0.c.b16.cont [2/8] 0, 128
        %1884 = vxpose.xlu0.c.b16.cont [3/8] 0, 128
        %1885 = vxpose.xlu0.c.b16.cont [4/8] 0, 128
        %1886 = vxpose.xlu0.c.b16.cont [5/8] 0, 128
        %1887 = vxpose.xlu0.c.b16.cont [6/8] 0, 128
        %1888 = vxpose.xlu0.c.b16.cont [7/8] 0, 128
        %1889 = vxpose.xlu0.c.b16.end [8/8] 0, 128
        %v1890 = vpop.trf.xlu0
        %v1891 = vpop.trf.xlu0
        %v1892 = vpop.trf.xlu0
        %v1893 = vpop.trf.xlu0
        %v1894 = vpop.trf.xlu0
        %v1895 = vpop.trf.xlu0
        %v1896 = vpop.trf.xlu0
        %v1897 = vpop.trf.xlu0
        %v1898 = vcombine.low %v1778, %v1842
        %v1900 = vunpack.c.l.s4 1983009808
        %v1901 = vunpack.c.0.s8 %v1900
        %v1902 = vlaneseq
        %v1903 = vshrl.u32 %v1902, 7
        %v1904 = vsub.s32 %v1901, %v1903
        %v1905 = vrot.slane %v1898, %v1904
        %v1906 = vcombine.low %v1810, %v1874
        %v1908 = vunpack.c.l.s4 1983009808
        %v1909 = vunpack.c.0.s8 %v1908
        %v1910 = vlaneseq
        %v1911 = vshrl.u32 %v1910, 7
        %v1912 = vsub.s32 %v1909, %v1911
        %v1913 = vrot.slane %v1906, %v1912
        %v1914 = vcombine.low %v1905, %v1913
        %v1916 = vunpack.c.l.s4 1934713408
        %v1917 = vunpack.c.0.s8 %v1916
        %v1918 = vlaneseq
        %v1919 = vshrl.u32 %v1918, 7
        %v1920 = vsub.s32 %v1917, %v1919
        %v1921 = vrot.slane %v1914, %v1920
        %v1922 = vcombine.high %v1921, 0
        %v1923 = vcombine.low %v1794, %v1858
        %v1925 = vunpack.c.l.s4 1983009808
        %v1926 = vunpack.c.0.s8 %v1925
        %v1927 = vlaneseq
        %v1928 = vshrl.u32 %v1927, 7
        %v1929 = vsub.s32 %v1926, %v1928
        %v1930 = vrot.slane %v1923, %v1929
        %v1931 = vcombine.low %v1826, %v1890
        %v1933 = vunpack.c.l.s4 1983009808
        %v1934 = vunpack.c.0.s8 %v1933
        %v1935 = vlaneseq
        %v1936 = vshrl.u32 %v1935, 7
        %v1937 = vsub.s32 %v1934, %v1936
        %v1938 = vrot.slane %v1931, %v1937
        %v1939 = vcombine.low %v1930, %v1938
        %v1941 = vunpack.c.l.s4 1934713408
        %v1942 = vunpack.c.0.s8 %v1941
        %v1943 = vlaneseq
        %v1944 = vshrl.u32 %v1943, 7
        %v1945 = vsub.s32 %v1942, %v1944
        %v1946 = vrot.slane %v1939, %v1945
        %v1947 = vcombine.high %v1946, 0
        %v1950 = vpack.i.b16 %v1946, %v1921
        %v1951 = vshrl.u32 %v1921, 16
        %v1952 = vshrl.u32 %v1946, 16
        %v1953 = vpack.i.b16 %v1952, %v1951
        %v1956 = vpack.i.b16 %v1947, %v1922
        %v1957 = vshrl.u32 %v1922, 16
        %v1958 = vshrl.u32 %v1947, 16
        %v1959 = vpack.i.b16 %v1958, %v1957
        %v1961 = vsel %vm1308, %v1950, 0
        %v1964 = vsel %vm1308, %v1538, 0
        %1966 = vmatprep.subr.bf16.mxu0 0
        %1967 = vmatpush1.bf16.xpose.msra.mxu0 %v1964
        %1968 = vmatprep.subr.bf16.mxu0 0
        %1969 = vmatpush1.bf16.xpose.msra.mxu0 0
        %1970 = vmatprep.subr.bf16.mxu0 0
        %1971 = vmatpush1.bf16.xpose.msra.mxu0 0
        %1972 = vmatprep.subr.bf16.mxu0 0
        %1973 = vmatpush1.bf16.xpose.msra.mxu0 0
        %1974 = vmatprep.subr.bf16.mxu0 0
        %1975 = vmatpush1.bf16.xpose.msra.mxu0 0
        %1976 = vmatprep.subr.bf16.mxu0 0
        %1977 = vmatpush1.bf16.xpose.msra.mxu0 0
        %1978 = vmatprep.subr.bf16.mxu0 0
        %1979 = vmatpush1.bf16.xpose.msra.mxu0 0
        %1980 = vmatprep.subr.bf16.mxu0 0
        %1981 = vmatpush1.bf16.xpose.msra.mxu0 0
        %1982 = vmatprep.subr.bf16.mxu0 0
        %1983 = vmatpush1.bf16.xpose.msra.mxu0 0
        %1984 = vmatprep.subr.bf16.mxu0 0
        %1985 = vmatpush1.bf16.xpose.msra.mxu0 0
        %1986 = vmatprep.subr.bf16.mxu0 0
        %1987 = vmatpush1.bf16.xpose.msra.mxu0 0
        %1988 = vmatprep.subr.bf16.mxu0 0
        %1989 = vmatpush1.bf16.xpose.msra.mxu0 0
        %1990 = vmatprep.subr.bf16.mxu0 0
        %1991 = vmatpush1.bf16.xpose.msra.mxu0 0
        %1992 = vmatprep.subr.bf16.mxu0 0
        %1993 = vmatpush1.bf16.xpose.msra.mxu0 0
        %1994 = vmatprep.subr.bf16.mxu0 0
        %1995 = vmatpush1.bf16.xpose.msra.mxu0 0
        %1996 = vmatprep.subr.bf16.mxu0 0
        %1997 = vmatpush1.bf16.xpose.msra.mxu0 0
        %1998 = vmatprep.mubr.bf16.mxu0 0
        %1999 = vmatmul.mubr.bf16.gmra.mrb[0].mxu0 %v1961
        %v2000 = vpop.f32.mrb[0].mxu0
        %v2001 = vadd.f32 0.0, %v2000
        %v2002 = vpop.f32.mrb[0].mxu0
        %v2003 = vpop.f32.mrb[0].mxu0
        %v2004 = vpop.f32.mrb[0].mxu0
        %2005 = vdwg.mxu0
        %v2007 = vsel %vm1308, %v1953, 0
        %v2010 = vsel %vm1308, %v1539, 0
        %2012 = vmatprep.subr.bf16.mxu0 0
        %2013 = vmatpush1.bf16.xpose.msra.mxu0 %v2010
        %2014 = vmatprep.subr.bf16.mxu0 0
        %2015 = vmatpush1.bf16.xpose.msra.mxu0 0
        %2016 = vmatprep.subr.bf16.mxu0 0
        %2017 = vmatpush1.bf16.xpose.msra.mxu0 0
        %2018 = vmatprep.subr.bf16.mxu0 0
        %2019 = vmatpush1.bf16.xpose.msra.mxu0 0
        %2020 = vmatprep.subr.bf16.mxu0 0
        %2021 = vmatpush1.bf16.xpose.msra.mxu0 0
        %2022 = vmatprep.subr.bf16.mxu0 0
        %2023 = vmatpush1.bf16.xpose.msra.mxu0 0
        %2024 = vmatprep.subr.bf16.mxu0 0
        %2025 = vmatpush1.bf16.xpose.msra.mxu0 0
        %2026 = vmatprep.subr.bf16.mxu0 0
        %2027 = vmatpush1.bf16.xpose.msra.mxu0 0
        %2028 = vmatprep.subr.bf16.mxu0 0
        %2029 = vmatpush1.bf16.xpose.msra.mxu0 0
        %2030 = vmatprep.subr.bf16.mxu0 0
        %2031 = vmatpush1.bf16.xpose.msra.mxu0 0
        %2032 = vmatprep.subr.bf16.mxu0 0
        %2033 = vmatpush1.bf16.xpose.msra.mxu0 0
        %2034 = vmatprep.subr.bf16.mxu0 0
        %2035 = vmatpush1.bf16.xpose.msra.mxu0 0
        %2036 = vmatprep.subr.bf16.mxu0 0
        %2037 = vmatpush1.bf16.xpose.msra.mxu0 0
        %2038 = vmatprep.subr.bf16.mxu0 0
        %2039 = vmatpush1.bf16.xpose.msra.mxu0 0
        %2040 = vmatprep.subr.bf16.mxu0 0
        %2041 = vmatpush1.bf16.xpose.msra.mxu0 0
        %2042 = vmatprep.subr.bf16.mxu0 0
        %2043 = vmatpush1.bf16.xpose.msra.mxu0 0
        %2044 = vmatprep.mubr.bf16.mxu0 0
        %2045 = vmatmul.mubr.bf16.gmra.mrb[0].mxu0 %v2007
        %v2046 = vpop.f32.mrb[0].mxu0
        %v2047 = vadd.f32 0.0, %v2046
        %v2048 = vpop.f32.mrb[0].mxu0
        %v2049 = vpop.f32.mrb[0].mxu0
        %v2050 = vpop.f32.mrb[0].mxu0
        %2051 = vdwg.mxu0
        %v2053 = vsel %vm1308, %v1956, 0
        %v2056 = vsel %vm1308, %v1540, 0
        %2058 = vmatprep.subr.bf16.mxu0 0
        %2059 = vmatpush1.bf16.xpose.msra.mxu0 %v2056
        %2060 = vmatprep.subr.bf16.mxu0 0
        %2061 = vmatpush1.bf16.xpose.msra.mxu0 0
        %2062 = vmatprep.subr.bf16.mxu0 0
        %2063 = vmatpush1.bf16.xpose.msra.mxu0 0
        %2064 = vmatprep.subr.bf16.mxu0 0
        %2065 = vmatpush1.bf16.xpose.msra.mxu0 0
        %2066 = vmatprep.subr.bf16.mxu0 0
        %2067 = vmatpush1.bf16.xpose.msra.mxu0 0
        %2068 = vmatprep.subr.bf16.mxu0 0
        %2069 = vmatpush1.bf16.xpose.msra.mxu0 0
        %2070 = vmatprep.subr.bf16.mxu0 0
        %2071 = vmatpush1.bf16.xpose.msra.mxu0 0
        %2072 = vmatprep.subr.bf16.mxu0 0
        %2073 = vmatpush1.bf16.xpose.msra.mxu0 0
        %2074 = vmatprep.subr.bf16.mxu0 0
        %2075 = vmatpush1.bf16.xpose.msra.mxu0 0
        %2076 = vmatprep.subr.bf16.mxu0 0
        %2077 = vmatpush1.bf16.xpose.msra.mxu0 0
        %2078 = vmatprep.subr.bf16.mxu0 0
        %2079 = vmatpush1.bf16.xpose.msra.mxu0 0
        %2080 = vmatprep.subr.bf16.mxu0 0
        %2081 = vmatpush1.bf16.xpose.msra.mxu0 0
        %2082 = vmatprep.subr.bf16.mxu0 0
        %2083 = vmatpush1.bf16.xpose.msra.mxu0 0
        %2084 = vmatprep.subr.bf16.mxu0 0
        %2085 = vmatpush1.bf16.xpose.msra.mxu0 0
        %2086 = vmatprep.subr.bf16.mxu0 0
        %2087 = vmatpush1.bf16.xpose.msra.mxu0 0
        %2088 = vmatprep.subr.bf16.mxu0 0
        %2089 = vmatpush1.bf16.xpose.msra.mxu0 0
        %2090 = vmatprep.mubr.bf16.mxu0 0
        %2091 = vmatmul.mubr.bf16.gmra.mrb[0].mxu0 %v2053
        %v2092 = vpop.f32.mrb[0].mxu0
        %v2093 = vadd.f32 0.0, %v2092
        %v2094 = vpop.f32.mrb[0].mxu0
        %v2095 = vpop.f32.mrb[0].mxu0
        %v2096 = vpop.f32.mrb[0].mxu0
        %2097 = vdwg.mxu0
        %v2099 = vsel %vm1308, %v1959, 0
        %v2102 = vsel %vm1308, %v1541, 0
        %2104 = vmatprep.subr.bf16.mxu0 0
        %2105 = vmatpush1.bf16.xpose.msra.mxu0 %v2102
        %2106 = vmatprep.subr.bf16.mxu0 0
        %2107 = vmatpush1.bf16.xpose.msra.mxu0 0
        %2108 = vmatprep.subr.bf16.mxu0 0
        %2109 = vmatpush1.bf16.xpose.msra.mxu0 0
        %2110 = vmatprep.subr.bf16.mxu0 0
        %2111 = vmatpush1.bf16.xpose.msra.mxu0 0
        %2112 = vmatprep.subr.bf16.mxu0 0
        %2113 = vmatpush1.bf16.xpose.msra.mxu0 0
        %2114 = vmatprep.subr.bf16.mxu0 0
        %2115 = vmatpush1.bf16.xpose.msra.mxu0 0
        %2116 = vmatprep.subr.bf16.mxu0 0
        %2117 = vmatpush1.bf16.xpose.msra.mxu0 0
        %2118 = vmatprep.subr.bf16.mxu0 0
        %2119 = vmatpush1.bf16.xpose.msra.mxu0 0
        %2120 = vmatprep.subr.bf16.mxu0 0
        %2121 = vmatpush1.bf16.xpose.msra.mxu0 0
        %2122 = vmatprep.subr.bf16.mxu0 0
        %2123 = vmatpush1.bf16.xpose.msra.mxu0 0
        %2124 = vmatprep.subr.bf16.mxu0 0
        %2125 = vmatpush1.bf16.xpose.msra.mxu0 0
        %2126 = vmatprep.subr.bf16.mxu0 0
        %2127 = vmatpush1.bf16.xpose.msra.mxu0 0
        %2128 = vmatprep.subr.bf16.mxu0 0
        %2129 = vmatpush1.bf16.xpose.msra.mxu0 0
        %2130 = vmatprep.subr.bf16.mxu0 0
        %2131 = vmatpush1.bf16.xpose.msra.mxu0 0
        %2132 = vmatprep.subr.bf16.mxu0 0
        %2133 = vmatpush1.bf16.xpose.msra.mxu0 0
        %2134 = vmatprep.subr.bf16.mxu0 0
        %2135 = vmatpush1.bf16.xpose.msra.mxu0 0
        %2136 = vmatprep.mubr.bf16.mxu0 0
        %2137 = vmatmul.mubr.bf16.gmra.mrb[0].mxu0 %v2099
        %v2138 = vpop.f32.mrb[0].mxu0
        %v2139 = vadd.f32 0.0, %v2138
        %v2140 = vpop.f32.mrb[0].mxu0
        %v2141 = vpop.f32.mrb[0].mxu0
        %v2142 = vpop.f32.mrb[0].mxu0
        %2143 = vdwg.mxu0
        %2144 = vxpose.xlu0.b32.start [1/16] %v2001, 128
        %2145 = vxpose.xlu0.b32.cont [2/16] 0.0, 128
        %2146 = vxpose.xlu0.b32.cont [3/16] 0.0, 128
        %2147 = vxpose.xlu0.b32.cont [4/16] 0.0, 128
        %2148 = vxpose.xlu0.b32.cont [5/16] 0.0, 128
        %2149 = vxpose.xlu0.b32.cont [6/16] 0.0, 128
        %2150 = vxpose.xlu0.b32.cont [7/16] 0.0, 128
        %2151 = vxpose.xlu0.b32.cont [8/16] 0.0, 128
        %2152 = vxpose.xlu0.b32.cont [9/16] 0.0, 128
        %2153 = vxpose.xlu0.b32.cont [10/16] 0.0, 128
        %2154 = vxpose.xlu0.b32.cont [11/16] 0.0, 128
        %2155 = vxpose.xlu0.b32.cont [12/16] 0.0, 128
        %2156 = vxpose.xlu0.b32.cont [13/16] 0.0, 128
        %2157 = vxpose.xlu0.b32.cont [14/16] 0.0, 128
        %2158 = vxpose.xlu0.b32.cont [15/16] 0.0, 128
        %2159 = vxpose.xlu0.b32.end [16/16] 0.0, 128
        %v2160 = vpop.trf.xlu0
        %v2161 = vpop.trf.xlu0
        %v2162 = vpop.trf.xlu0
        %v2163 = vpop.trf.xlu0
        %v2164 = vpop.trf.xlu0
        %v2165 = vpop.trf.xlu0
        %v2166 = vpop.trf.xlu0
        %v2167 = vpop.trf.xlu0
        %v2168 = vpop.trf.xlu0
        %v2169 = vpop.trf.xlu0
        %v2170 = vpop.trf.xlu0
        %v2171 = vpop.trf.xlu0
        %v2172 = vpop.trf.xlu0
        %v2173 = vpop.trf.xlu0
        %v2174 = vpop.trf.xlu0
        %v2175 = vpop.trf.xlu0
        %2176 = vxpose.xlu0.b32.start [1/16] %v2047, 128
        %2177 = vxpose.xlu0.b32.cont [2/16] 0.0, 128
        %2178 = vxpose.xlu0.b32.cont [3/16] 0.0, 128
        %2179 = vxpose.xlu0.b32.cont [4/16] 0.0, 128
        %2180 = vxpose.xlu0.b32.cont [5/16] 0.0, 128
        %2181 = vxpose.xlu0.b32.cont [6/16] 0.0, 128
        %2182 = vxpose.xlu0.b32.cont [7/16] 0.0, 128
        %2183 = vxpose.xlu0.b32.cont [8/16] 0.0, 128
        %2184 = vxpose.xlu0.b32.cont [9/16] 0.0, 128
        %2185 = vxpose.xlu0.b32.cont [10/16] 0.0, 128
        %2186 = vxpose.xlu0.b32.cont [11/16] 0.0, 128
        %2187 = vxpose.xlu0.b32.cont [12/16] 0.0, 128
        %2188 = vxpose.xlu0.b32.cont [13/16] 0.0, 128
        %2189 = vxpose.xlu0.b32.cont [14/16] 0.0, 128
        %2190 = vxpose.xlu0.b32.cont [15/16] 0.0, 128
        %2191 = vxpose.xlu0.b32.end [16/16] 0.0, 128
        %v2192 = vpop.trf.xlu0
        %v2193 = vpop.trf.xlu0
        %v2194 = vpop.trf.xlu0
        %v2195 = vpop.trf.xlu0
        %v2196 = vpop.trf.xlu0
        %v2197 = vpop.trf.xlu0
        %v2198 = vpop.trf.xlu0
        %v2199 = vpop.trf.xlu0
        %v2200 = vpop.trf.xlu0
        %v2201 = vpop.trf.xlu0
        %v2202 = vpop.trf.xlu0
        %v2203 = vpop.trf.xlu0
        %v2204 = vpop.trf.xlu0
        %v2205 = vpop.trf.xlu0
        %v2206 = vpop.trf.xlu0
        %v2207 = vpop.trf.xlu0
        %2208 = vxpose.xlu0.b32.start [1/16] %v2093, 128
        %2209 = vxpose.xlu0.b32.cont [2/16] 0.0, 128
        %2210 = vxpose.xlu0.b32.cont [3/16] 0.0, 128
        %2211 = vxpose.xlu0.b32.cont [4/16] 0.0, 128
        %2212 = vxpose.xlu0.b32.cont [5/16] 0.0, 128
        %2213 = vxpose.xlu0.b32.cont [6/16] 0.0, 128
        %2214 = vxpose.xlu0.b32.cont [7/16] 0.0, 128
        %2215 = vxpose.xlu0.b32.cont [8/16] 0.0, 128
        %2216 = vxpose.xlu0.b32.cont [9/16] 0.0, 128
        %2217 = vxpose.xlu0.b32.cont [10/16] 0.0, 128
        %2218 = vxpose.xlu0.b32.cont [11/16] 0.0, 128
        %2219 = vxpose.xlu0.b32.cont [12/16] 0.0, 128
        %2220 = vxpose.xlu0.b32.cont [13/16] 0.0, 128
        %2221 = vxpose.xlu0.b32.cont [14/16] 0.0, 128
        %2222 = vxpose.xlu0.b32.cont [15/16] 0.0, 128
        %2223 = vxpose.xlu0.b32.end [16/16] 0.0, 128
        %v2224 = vpop.trf.xlu0
        %v2225 = vpop.trf.xlu0
        %v2226 = vpop.trf.xlu0
        %v2227 = vpop.trf.xlu0
        %v2228 = vpop.trf.xlu0
        %v2229 = vpop.trf.xlu0
        %v2230 = vpop.trf.xlu0
        %v2231 = vpop.trf.xlu0
        %v2232 = vpop.trf.xlu0
        %v2233 = vpop.trf.xlu0
        %v2234 = vpop.trf.xlu0
        %v2235 = vpop.trf.xlu0
        %v2236 = vpop.trf.xlu0
        %v2237 = vpop.trf.xlu0
        %v2238 = vpop.trf.xlu0
        %v2239 = vpop.trf.xlu0
        %2240 = vxpose.xlu0.b32.start [1/16] %v2139, 128
        %2241 = vxpose.xlu0.b32.cont [2/16] 0.0, 128
        %2242 = vxpose.xlu0.b32.cont [3/16] 0.0, 128
        %2243 = vxpose.xlu0.b32.cont [4/16] 0.0, 128
        %2244 = vxpose.xlu0.b32.cont [5/16] 0.0, 128
        %2245 = vxpose.xlu0.b32.cont [6/16] 0.0, 128
        %2246 = vxpose.xlu0.b32.cont [7/16] 0.0, 128
        %2247 = vxpose.xlu0.b32.cont [8/16] 0.0, 128
        %2248 = vxpose.xlu0.b32.cont [9/16] 0.0, 128
        %2249 = vxpose.xlu0.b32.cont [10/16] 0.0, 128
        %2250 = vxpose.xlu0.b32.cont [11/16] 0.0, 128
        %2251 = vxpose.xlu0.b32.cont [12/16] 0.0, 128
        %2252 = vxpose.xlu0.b32.cont [13/16] 0.0, 128
        %2253 = vxpose.xlu0.b32.cont [14/16] 0.0, 128
        %2254 = vxpose.xlu0.b32.cont [15/16] 0.0, 128
        %2255 = vxpose.xlu0.b32.end [16/16] 0.0, 128
        %v2256 = vpop.trf.xlu0
        %v2257 = vpop.trf.xlu0
        %v2258 = vpop.trf.xlu0
        %v2259 = vpop.trf.xlu0
        %v2260 = vpop.trf.xlu0
        %v2261 = vpop.trf.xlu0
        %v2262 = vpop.trf.xlu0
        %v2263 = vpop.trf.xlu0
        %v2264 = vpop.trf.xlu0
        %v2265 = vpop.trf.xlu0
        %v2266 = vpop.trf.xlu0
        %v2267 = vpop.trf.xlu0
        %v2268 = vpop.trf.xlu0
        %v2269 = vpop.trf.xlu0
        %v2270 = vpop.trf.xlu0
        %v2271 = vpop.trf.xlu0
        %v2272 = vcombine.low %v2160, %v2224
        %v2273 = vcombine.high %v2160, %v2224
        %v2275 = vunpack.c.l.s4 1983009808
        %v2276 = vunpack.c.0.s8 %v2275
        %v2277 = vlaneseq
        %v2278 = vshrl.u32 %v2277, 7
        %v2279 = vsub.s32 %v2276, %v2278
        %v2280 = vrot.slane %v2272, %v2279
        %v2282 = vunpack.c.l.s4 1983009808
        %v2283 = vunpack.c.0.s8 %v2282
        %v2284 = vlaneseq
        %v2285 = vshrl.u32 %v2284, 7
        %v2286 = vsub.s32 %v2283, %v2285
        %v2287 = vrot.slane %v2273, %v2286
        %v2288 = vcombine.low %v2192, %v2256
        %v2289 = vcombine.high %v2192, %v2256
        %v2291 = vunpack.c.l.s4 1983009808
        %v2292 = vunpack.c.0.s8 %v2291
        %v2293 = vlaneseq
        %v2294 = vshrl.u32 %v2293, 7
        %v2295 = vsub.s32 %v2292, %v2294
        %v2296 = vrot.slane %v2288, %v2295
        %v2298 = vunpack.c.l.s4 1983009808
        %v2299 = vunpack.c.0.s8 %v2298
        %v2300 = vlaneseq
        %v2301 = vshrl.u32 %v2300, 7
        %v2302 = vsub.s32 %v2299, %v2301
        %v2303 = vrot.slane %v2289, %v2302
        %v2304 = vcombine.low %v2280, %v2296
        %v2305 = vcombine.high %v2280, %v2296
        %v2307 = vunpack.c.l.s4 1934713408
        %v2308 = vunpack.c.0.s8 %v2307
        %v2309 = vlaneseq
        %v2310 = vshrl.u32 %v2309, 7
        %v2311 = vsub.s32 %v2308, %v2310
        %v2312 = vrot.slane %v2304, %v2311
        %v2314 = vunpack.c.l.s4 1934713408
        %v2315 = vunpack.c.0.s8 %v2314
        %v2316 = vlaneseq
        %v2317 = vshrl.u32 %v2316, 7
        %v2318 = vsub.s32 %v2315, %v2317
        %v2319 = vrot.slane %v2305, %v2318
        %v2320 = vcombine.low %v2287, %v2303
        %v2321 = vcombine.high %v2287, %v2303
        %v2323 = vunpack.c.l.s4 1934713408
        %v2324 = vunpack.c.0.s8 %v2323
        %v2325 = vlaneseq
        %v2326 = vshrl.u32 %v2325, 7
        %v2327 = vsub.s32 %v2324, %v2326
        %v2328 = vrot.slane %v2320, %v2327
        %v2330 = vunpack.c.l.s4 1934713408
        %v2331 = vunpack.c.0.s8 %v2330
        %v2332 = vlaneseq
        %v2333 = vshrl.u32 %v2332, 7
        %v2334 = vsub.s32 %v2331, %v2333
        %v2335 = vrot.slane %v2321, %v2334
        %v2336 = vcombine.high %v2312, 0.0
        %v2337 = vcombine.high %v2319, 0.0
        %v2338 = vcombine.high %v2328, 0.0
        %v2339 = vcombine.high %v2335, 0.0
        %v2340 = vcombine.low %v2312, %v2319
        %v2342 = vunpack.c.l.s4 1983009808
        %v2343 = vunpack.c.0.s8 %v2342
        %v2344 = vlaneseq
        %v2345 = vshrl.u32 %v2344, 7
        %v2346 = vsub.s32 %v2343, %v2345
        %v2347 = vrot.slane %v2340, %v2346
        %v2348 = vcombine.low %v2336, %v2337
        %v2350 = vunpack.c.l.s4 1983009808
        %v2351 = vunpack.c.0.s8 %v2350
        %v2352 = vlaneseq
        %v2353 = vshrl.u32 %v2352, 7
        %v2354 = vsub.s32 %v2351, %v2353
        %v2355 = vrot.slane %v2348, %v2354
        %v2356 = vcombine.low %v2328, %v2335
        %v2358 = vunpack.c.l.s4 1983009808
        %v2359 = vunpack.c.0.s8 %v2358
        %v2360 = vlaneseq
        %v2361 = vshrl.u32 %v2360, 7
        %v2362 = vsub.s32 %v2359, %v2361
        %v2363 = vrot.slane %v2356, %v2362
        %v2364 = vcombine.low %v2338, %v2339
        %v2366 = vunpack.c.l.s4 1983009808
        %v2367 = vunpack.c.0.s8 %v2366
        %v2368 = vlaneseq
        %v2369 = vshrl.u32 %v2368, 7
        %v2370 = vsub.s32 %v2367, %v2369
        %v2371 = vrot.slane %v2364, %v2370
        %v2372 = vcombine.low %v2347, %v2355
        %v2373 = vcombine.high %v2347, %v2355
        %v2375 = vunpack.c.l.s4 1934713408
        %v2376 = vunpack.c.0.s8 %v2375
        %v2377 = vlaneseq
        %v2378 = vshrl.u32 %v2377, 7
        %v2379 = vsub.s32 %v2376, %v2378
        %v2380 = vrot.slane %v2372, %v2379
        %v2382 = vunpack.c.l.s4 1934713408
        %v2383 = vunpack.c.0.s8 %v2382
        %v2384 = vlaneseq
        %v2385 = vshrl.u32 %v2384, 7
        %v2386 = vsub.s32 %v2383, %v2385
        %v2387 = vrot.slane %v2373, %v2386
        %v2388 = vcombine.low %v2363, %v2371
        %v2389 = vcombine.high %v2363, %v2371
        %v2391 = vunpack.c.l.s4 1934713408
        %v2392 = vunpack.c.0.s8 %v2391
        %v2393 = vlaneseq
        %v2394 = vshrl.u32 %v2393, 7
        %v2395 = vsub.s32 %v2392, %v2394
        %v2396 = vrot.slane %v2388, %v2395
        %v2398 = vunpack.c.l.s4 1934713408
        %v2399 = vunpack.c.0.s8 %v2398
        %v2400 = vlaneseq
        %v2401 = vshrl.u32 %v2400, 7
        %v2402 = vsub.s32 %v2399, %v2401
        %v2403 = vrot.slane %v2389, %v2402
        %v2404 = vcombine.low %v2380, %v2396
        %v2405 = vcombine.high %v2380, %v2396
        %v2406 = vcombine.low %v2387, %v2403
        %v2407 = vcombine.high %v2387, %v2403
        %2409 = vrot.lane.b32.xlu0 %v2405, 8
        %v2410 = vpop.permute.xlu0 %2409
        %2413 = vrot.lane.b32.xlu0 %v2406, 16
        %v2414 = vpop.permute.xlu0 %2413
        %2417 = vrot.lane.b32.xlu0 %v2407, 24
        %v2418 = vpop.permute.xlu0 %2417
        %v2420 = vsel %vm1308, %v2404, %v2410
        %vm2421 = vcmask 130048
        %v2422 = vsel %vm2421, %v2420, %v2414
        %vm2423 = vcmask 195584
        %v2424 = vsel %vm2423, %v2422, %v2418
        %v2425 = vld [vmem:[%s8] sm:$0x3f]
        %v2426 = vpack.c.bf16 %v2424, %v2424
        %v2427 = vld [vmem:[#allocation2] sm:$0xf]
        %v2428 = vld [vmem:[#allocation2 + $0x4] sm:$0xf]
        %v2429 = vld [vmem:[#allocation2 + $0x8] sm:$0xf]
        %v2430 = vld [vmem:[#allocation2 + $0xc] sm:$0xf]
        %v2431 = vlaneseq
        %v2432 = vshrl.u32 %v2431, 7
        %v2433 = vsub.s32 0, %v2432
        %v2434 = vrot.slane %v2425, %v2433
        %v2439 = vunpack.c.l.b16 %v2427
        %v2440 = vunpack.c.l.b16 %v2428
        %v2441 = vunpack.c.l.b16 %v2429
        %v2442 = vunpack.c.l.b16 %v2430
        %v2443 = vpack.c.b16 %v2440, %v2439
        %v2444 = vpack.c.b16 %v2442, %v2441
        %v2448 = vsel %vm514, %v2426, 0
        %2450 = vmatprep.subr.bf16.mxu0 0
        %2451 = vmatpush1.bf16.msra.mxu0 %v2443
        %2452 = vmatprep.subr.bf16.mxu0 0
        %2453 = vmatpush1.bf16.msra.mxu0 %v2444
        %2454 = vmatprep.subr.bf16.mxu0 0
        %2455 = vmatpush1.bf16.msra.mxu0 0
        %2456 = vmatprep.subr.bf16.mxu0 0
        %2457 = vmatpush1.bf16.msra.mxu0 0
        %2458 = vmatprep.subr.bf16.mxu0 0
        %2459 = vmatpush1.bf16.msra.mxu0 0
        %2460 = vmatprep.subr.bf16.mxu0 0
        %2461 = vmatpush1.bf16.msra.mxu0 0
        %2462 = vmatprep.subr.bf16.mxu0 0
        %2463 = vmatpush1.bf16.msra.mxu0 0
        %2464 = vmatprep.subr.bf16.mxu0 0
        %2465 = vmatpush1.bf16.msra.mxu0 0
        %2466 = vmatprep.subr.bf16.mxu0 0
        %2467 = vmatpush1.bf16.msra.mxu0 0
        %2468 = vmatprep.subr.bf16.mxu0 0
        %2469 = vmatpush1.bf16.msra.mxu0 0
        %2470 = vmatprep.subr.bf16.mxu0 0
        %2471 = vmatpush1.bf16.msra.mxu0 0
        %2472 = vmatprep.subr.bf16.mxu0 0
        %2473 = vmatpush1.bf16.msra.mxu0 0
        %2474 = vmatprep.subr.bf16.mxu0 0
        %2475 = vmatpush1.bf16.msra.mxu0 0
        %2476 = vmatprep.subr.bf16.mxu0 0
        %2477 = vmatpush1.bf16.msra.mxu0 0
        %2478 = vmatprep.subr.bf16.mxu0 0
        %2479 = vmatpush1.bf16.msra.mxu0 0
        %2480 = vmatprep.subr.bf16.mxu0 0
        %2481 = vmatpush1.bf16.msra.mxu0 0
        %2482 = vmatprep.mubr.bf16.mxu0 0
        %2483 = vmatmul.mubr.bf16.gmra.mrb[0].mxu0 %v2448
        %v2484 = vpop.f32.mrb[0].mxu0
        %v2485 = vadd.f32 %v2434, %v2484
        %v2486 = vpop.f32.mrb[0].mxu0
        %v2487 = vpop.f32.mrb[0].mxu0
        %v2488 = vpop.f32.mrb[0].mxu0
        %2489 = vdwg.mxu0
        %v2490 = vadd.f32 %v487, %v2485
        %v2491 = vsel %vm514, %v2490, 0.0
        %2492 = vadd.xlane.f32.xlu0 %v2491
        %v2493 = vpop.xlane.xlu0 %2492
        %v2494 = vrcp.pop 32.0
        %v2495 = vmul.f32 %v2493, %v2494
        %v2496 = vsub.f32 %v2490, %v2495
        %v2497 = vmul.f32 %v2496, %v2496
        %v2498 = vsel %vm514, %v2497, 0.0
        %2499 = vadd.xlane.f32.xlu0 %v2498
        %v2500 = vpop.xlane.xlu0 %2499
        %v2501 = vmul.f32 %v2500, %v2494
        %v2502 = vadd.f32 %v2501, 1e-05
        %v2503 = vrsqrt.pop %v2502
        %v2504 = vmul.f32 %v2496, %v2503
        %v2505 = vlaneseq
        %v2506 = vshrl.u32 %v2505, 7
        %v2507 = vsub.s32 1, %v2506
        %v2508 = vrot.slane %v2425, %v2507
        %v2509 = vmul.f32 %v2504, %v2508
        %v2510 = vlaneseq
        %v2511 = vshrl.u32 %v2510, 7
        %v2512 = vsub.s32 2, %v2511
        %v2513 = vrot.slane %v2425, %v2512
        %v2514 = vadd.f32 %v2509, %v2513
        %v2515 = vpack.c.bf16 %v2514, %v2514
        %v2516 = vld [vmem:[#allocation5] sm:$0xf]
        %v2517 = vld [vmem:[#allocation5 + $0x4] sm:$0xf]
        %v2518 = vld [vmem:[#allocation5 + $0x8] sm:$0xf]
        %v2519 = vld [vmem:[#allocation5 + $0xc] sm:$0xf]
        %v2520 = vld [vmem:[%s6] sm:$0x1]
        %v2522 = vlaneseq
        %v2523 = vshrl.u32 %v2522, 7
        %v2524 = vsub.s32 0, %v2523
        %v2525 = vrot.slane %v2520, %v2524
        %v2531 = vunpack.c.l.b16 %v2516
        %v2532 = vunpack.c.l.b16 %v2517
        %v2533 = vunpack.c.l.b16 %v2518
        %v2534 = vunpack.c.l.b16 %v2519
        %v2535 = vpack.c.b16 %v2532, %v2531
        %v2536 = vpack.c.b16 %v2534, %v2533
        %v2540 = vsel %vm514, %v2515, 0
        %2542 = vmatprep.subr.bf16.mxu0 0
        %2543 = vmatpush1.bf16.msra.mxu0 %v2535
        %2544 = vmatprep.subr.bf16.mxu0 0
        %2545 = vmatpush1.bf16.msra.mxu0 %v2536
        %2546 = vmatprep.subr.bf16.mxu0 0
        %2547 = vmatpush1.bf16.msra.mxu0 0
        %2548 = vmatprep.subr.bf16.mxu0 0
        %2549 = vmatpush1.bf16.msra.mxu0 0
        %2550 = vmatprep.subr.bf16.mxu0 0
        %2551 = vmatpush1.bf16.msra.mxu0 0
        %2552 = vmatprep.subr.bf16.mxu0 0
        %2553 = vmatpush1.bf16.msra.mxu0 0
        %2554 = vmatprep.subr.bf16.mxu0 0
        %2555 = vmatpush1.bf16.msra.mxu0 0
        %2556 = vmatprep.subr.bf16.mxu0 0
        %2557 = vmatpush1.bf16.msra.mxu0 0
        %2558 = vmatprep.subr.bf16.mxu0 0
        %2559 = vmatpush1.bf16.msra.mxu0 0
        %2560 = vmatprep.subr.bf16.mxu0 0
        %2561 = vmatpush1.bf16.msra.mxu0 0
        %2562 = vmatprep.subr.bf16.mxu0 0
        %2563 = vmatpush1.bf16.msra.mxu0 0
        %2564 = vmatprep.subr.bf16.mxu0 0
        %2565 = vmatpush1.bf16.msra.mxu0 0
        %2566 = vmatprep.subr.bf16.mxu0 0
        %2567 = vmatpush1.bf16.msra.mxu0 0
        %2568 = vmatprep.subr.bf16.mxu0 0
        %2569 = vmatpush1.bf16.msra.mxu0 0
        %2570 = vmatprep.subr.bf16.mxu0 0
        %2571 = vmatpush1.bf16.msra.mxu0 0
        %2572 = vmatprep.subr.bf16.mxu0 0
        %2573 = vmatpush1.bf16.msra.mxu0 0
        %2574 = vmatprep.mubr.bf16.mxu0 0
        %2575 = vmatmul.mubr.bf16.gmra.mrb[0].mxu0 %v2540
        %v2576 = vpop.f32.mrb[0].mxu0
        %v2577 = vadd.f32 %v2525, %v2576
        %v2578 = vpop.f32.mrb[0].mxu0
        %v2579 = vpop.f32.mrb[0].mxu0
        %v2580 = vpop.f32.mrb[0].mxu0
        %2581 = vdwg.mxu0
        %v2582 = vmax.f32 %v2577, 0.0
        %v2583 = vpack.c.bf16 %v2582, %v2582
        %v2584 = vld [vmem:[%s7] sm:$0xf]
        %v2585 = vld [vmem:[%s7 + $0x4] sm:$0xf]
        %v2586 = vld [vmem:[%s7 + $0x8] sm:$0xf]
        %v2587 = vld [vmem:[%s7 + $0xc] sm:$0xf]
        %v2588 = vld [vmem:[%s7 + $0x10] sm:$0xf]
        %v2589 = vld [vmem:[%s7 + $0x14] sm:$0xf]
        %v2590 = vld [vmem:[%s7 + $0x18] sm:$0xf]
        %v2591 = vld [vmem:[%s7 + $0x1c] sm:$0xf]
        %v2592 = vlaneseq
        %v2593 = vshrl.u32 %v2592, 7
        %v2594 = vsub.s32 3, %v2593
        %v2595 = vrot.slane %v2425, %v2594
        %v2604 = vunpack.c.l.b16 %v2584
        %v2605 = vunpack.c.l.b16 %v2585
        %v2606 = vunpack.c.l.b16 %v2586
        %v2607 = vunpack.c.l.b16 %v2587
        %v2608 = vunpack.c.l.b16 %v2588
        %v2609 = vunpack.c.l.b16 %v2589
        %v2610 = vunpack.c.l.b16 %v2590
        %v2611 = vunpack.c.l.b16 %v2591
        %v2612 = vpack.c.b16 %v2605, %v2604
        %v2613 = vpack.c.b16 %v2607, %v2606
        %v2614 = vpack.c.b16 %v2609, %v2608
        %v2615 = vpack.c.b16 %v2611, %v2610
        %vm2620 = vcmask 523264
        %v2622 = vsel %vm2620, %v2583, 0
        %2624 = vmatprep.subr.bf16.mxu0 0
        %2625 = vmatpush1.bf16.msra.mxu0 %v2612
        %2626 = vmatprep.subr.bf16.mxu0 0
        %2627 = vmatpush1.bf16.msra.mxu0 %v2613
        %2628 = vmatprep.subr.bf16.mxu0 0
        %2629 = vmatpush1.bf16.msra.mxu0 %v2614
        %2630 = vmatprep.subr.bf16.mxu0 0
        %2631 = vmatpush1.bf16.msra.mxu0 %v2615
        %2632 = vmatprep.subr.bf16.mxu0 0
        %2633 = vmatpush1.bf16.msra.mxu0 0
        %2634 = vmatprep.subr.bf16.mxu0 0
        %2635 = vmatpush1.bf16.msra.mxu0 0
        %2636 = vmatprep.subr.bf16.mxu0 0
        %2637 = vmatpush1.bf16.msra.mxu0 0
        %2638 = vmatprep.subr.bf16.mxu0 0
        %2639 = vmatpush1.bf16.msra.mxu0 0
        %2640 = vmatprep.subr.bf16.mxu0 0
        %2641 = vmatpush1.bf16.msra.mxu0 0
        %2642 = vmatprep.subr.bf16.mxu0 0
        %2643 = vmatpush1.bf16.msra.mxu0 0
        %2644 = vmatprep.subr.bf16.mxu0 0
        %2645 = vmatpush1.bf16.msra.mxu0 0
        %2646 = vmatprep.subr.bf16.mxu0 0
        %2647 = vmatpush1.bf16.msra.mxu0 0
        %2648 = vmatprep.subr.bf16.mxu0 0
        %2649 = vmatpush1.bf16.msra.mxu0 0
        %2650 = vmatprep.subr.bf16.mxu0 0
        %2651 = vmatpush1.bf16.msra.mxu0 0
        %2652 = vmatprep.subr.bf16.mxu0 0
        %2653 = vmatpush1.bf16.msra.mxu0 0
        %2654 = vmatprep.subr.bf16.mxu0 0
        %2655 = vmatpush1.bf16.msra.mxu0 0
        %2656 = vmatprep.mubr.bf16.mxu0 0
        %2657 = vmatmul.mubr.bf16.gmra.mrb[0].mxu0 %v2622
        %v2658 = vpop.f32.mrb[0].mxu0
        %v2659 = vadd.f32 %v2595, %v2658
        %v2660 = vpop.f32.mrb[0].mxu0
        %v2661 = vpop.f32.mrb[0].mxu0
        %v2662 = vpop.f32.mrb[0].mxu0
        %2663 = vdwg.mxu0
        %v2664 = vadd.f32 %v2514, %v2659
        %v2665 = vsel %vm514, %v2664, 0.0
        %2666 = vadd.xlane.f32.xlu0 %v2665
        %v2667 = vpop.xlane.xlu0 %2666
        %v2668 = vmul.f32 %v2667, %v2494
        %v2669 = vsub.f32 %v2664, %v2668
        %v2670 = vmul.f32 %v2669, %v2669
        %v2671 = vsel %vm514, %v2670, 0.0
        %2672 = vadd.xlane.f32.xlu0 %v2671
        %v2673 = vpop.xlane.xlu0 %2672
        %v2674 = vmul.f32 %v2673, %v2494
        %v2675 = vadd.f32 %v2674, 1e-05
        %v2676 = vrsqrt.pop %v2675
        %v2677 = vmul.f32 %v2669, %v2676
        %v2678 = vlaneseq
        %v2679 = vshrl.u32 %v2678, 7
        %v2680 = vsub.s32 4, %v2679
        %v2681 = vrot.slane %v2425, %v2680
        %v2682 = vmul.f32 %v2677, %v2681
        %v2683 = vlaneseq
        %v2684 = vshrl.u32 %v2683, 7
        %v2685 = vsub.s32 5, %v2684
        %v2686 = vrot.slane %v2425, %v2685
        %v2687 = vadd.f32 %v2682, %v2686
        %2688 = vst.msk [vmem:[%s467] sm:$0xff] %vm514, %v2687
        %s2689 = sand.u32 %s297, 1
        %s2690 = scalar_lea.sflag [#allocation4], %s2689
        %s2691 = sand.u32 %s297, 1
        %s2692 = smul.addr %s2691, 8
        %s2693 = scalar_lea.vmem [#allocation8], %s2692
        // Predicated region
        $region77: #{tpu_custom_call.1} parent=63 // pred_check
          %p2694 = pneg %p307
        $region78: #{tpu_custom_call.1} parent=63 // pred_check_branch
          %2696 = sbr.rel (%p2694) target = $region80
        $region79: #{tpu_custom_call.1} parent=63 // pred_region
          %s2698 = ssub.s32 128, 128
          %2699 = vsyncadd %s2690, %s2698
          %s2700 = sadd.s32 %s32, %s31
          %s2701 = smul.addr %s2700, 128
          %s2702 = scalar_lea.hbm %s11, %s2701
          %s2704 = sshll.u32 %s2693, 4
          %s2705 = int_to_ptr.vmem [resolvable:$true] %s2704
          %2707 = dma.vmem_to_hbm [thread:$0]  %s2705, 128, %s2702, %s2690
        $region80: #{tpu_custom_call.1} parent=63 // pred_fallthru
          _
      $region64: #{tpu_custom_call.1} parent=5 // pred_fallthru
        _
      %p2708 = scmp.le.s32.totalorder 2, %s22
      // Predicated region
      $region81: #{tpu_custom_call.1} parent=5 // pred_check
        %p2709 = pneg %p2708
      $region82: #{tpu_custom_call.1} parent=5 // pred_check_branch
        %2711 = sbr.rel (%p2709) target = $region84
      $region83: #{tpu_custom_call.1} parent=5 // pred_region
        %s2712 = ssub.s32 %s22, 2
        // Predicated region
        $region85: #{tpu_custom_call.1} parent=83 // pred_check
          %p2713 = pneg %p313
        $region86: #{tpu_custom_call.1} parent=83 // pred_check_branch
          %2715 = sbr.rel (%p2713) target = $region88
        $region87: #{tpu_custom_call.1} parent=83 // pred_region
          %s2716 = sand.u32 %s298, 1
          %s2717 = scalar_lea.sflag [#allocation4], %s2716
          %s2718 = sand.u32 %s298, 1
          %s2719 = smul.addr %s2718, 8
          %s2720 = scalar_lea.vmem [#allocation8], %s2719
          %2721 = dma.done %s2717, 128
        $region88: #{tpu_custom_call.1} parent=83 // pred_fallthru
          _
      $region84: #{tpu_custom_call.1} parent=5 // pred_fallthru
        _
    $region6: #{tpu_custom_call.1} parent=1 // loop_footer
      %s26 = sadd.s32 1, %s22
    $region7: #{tpu_custom_call.1} parent=1 // loop_footer_branch
      %21 = sbr.rel target = $region3
    $region8: #{tpu_custom_call.1} parent=1 // loop_exit
      _
    %2722 = vsyncpa [#allocation3], 1
    %s2723 = scalar_lea.sflag [#allocation3], 1
    %2724 = vsyncpa %s2723, 1
    %2725 = vsyncpa [#allocation6], 1
    %2726 = vsyncpa [#allocation4], 1
    %s2727 = scalar_lea.sflag [#allocation4], 1
    %2728 = vsyncpa %s2727, 1

</llo_original>
